<compile_context>
chip_gen: v7x
topology: tpu7x:2x2x1
jax: 0.10.0
libtpu: 0.0.40
codegen_flags: <defaults>
</compile_context>

<pallas_src>
import math

import jax
import jax.numpy as jnp
from jax import lax
from jax.experimental import pallas as pl
from jax.experimental.pallas import tpu as pltpu

# ----------------------------- config ---------------------------------------
BATCH = 2
SEQ = 8
HIDDEN = 32
NUM_HEADS = 4
HEAD_SIZE = HIDDEN // NUM_HEADS             # 8
ROTARY_PCT = 0.25
ROTARY_NDIMS = int(HEAD_SIZE * ROTARY_PCT)  # 2
ROTARY_BASE = 10000.0
NORM_FACTOR = HEAD_SIZE ** (-0.5)
MASK_VALUE = float(jnp.finfo(jnp.float32).min)


# ------------------------- fused Pallas kernel -------------------------------
def _fused_attention_kernel(x_ref, wqkv_ref, bqkv_ref, cos_ref, sin_ref,
                            bias_ref, wd_ref, bd_ref,
                            out_ref, w_ref, ctx_ref):
    B, S, H, nH, D = BATCH, SEQ, HIDDEN, NUM_HEADS, HEAD_SIZE

    # ---- augmented QKV projection: (B*S, H) @ (H, 5H) + bias ----------------
    # column layout: [ Q_all | K_all | V_all | rotate_half(Q)_all | rotate_half(K)_all ]
    qkv = jnp.dot(x_ref[...], wqkv_ref[...], preferred_element_type=jnp.float32)
    qkv = qkv + bqkv_ref[...]                                    # (B*S, 5H)

    cos = cos_ref[...]            # (B*S, H): cos on rotary lanes, 1 elsewhere
    sin = sin_ref[...]            # (B*S, H): sin on rotary lanes, 0 elsewhere

    # slab-level RoPE: pure VPU (rotate_half already produced by the matmul).
    # NORM_FACTOR is pre-folded into the Q / rotQ columns.
    q = qkv[:, 0:H] * cos + qkv[:, 3 * H:4 * H] * sin            # (B*S, H)
    k = qkv[:, H:2 * H] * cos + qkv[:, 4 * H:5 * H] * sin        # (B*S, H)
    v = qkv[:, 2 * H:3 * H]                                      # (B*S, H)

    for b in range(B):
        r0 = b * S
        bias_b = bias_ref[r0:r0 + S, :]                          # (S, S) additive
        for h in range(nH):
            c0 = h * D
            qh = q[r0:r0 + S, c0:c0 + D]                         # (S, D)
            kh = k[r0:r0 + S, c0:c0 + D]
            vh = v[r0:r0 + S, c0:c0 + D]

            # scaled scores: contract head dims directly (no k transpose)
            s = lax.dot_general(qh, kh, (((1,), (1,)), ((), ())),
                                preferred_element_type=jnp.float32)
            s = s + bias_b                                       # causal + attn mask

            # softmax over keys (f32; approx reciprocal -> EUP slot)
            m = jnp.max(s, axis=-1, keepdims=True)
            e = jnp.exp(s - m)
            w = e * pl.reciprocal(jnp.sum(e, axis=-1, keepdims=True), approx=True)

            # lane-slice store into the 2-D weights slab (B*S, nH*S)
            w_ref[r0:r0 + S, h * S:(h + 1) * S] = w.astype(w_ref.dtype)

            # per-head context into merged-heads layout (for the single dense)
            ctx_ref[r0:r0 + S, c0:c0 + D] = jnp.dot(
                w, vh, preferred_element_type=jnp.float32)

    # ---- single dense projection over all rows / heads ----------------------
    out_ref[...] = (jnp.dot(ctx_ref[...], wd_ref[...],
                            preferred_element_type=jnp.float32)
                    + bd_ref[...]).astype(out_ref.dtype)


# ----------------------------- RoPE tables -----------------------------------
def rotary_cos_sin(seq_len, dim, base):
    inv_freq = 1.0 / (base ** (jnp.arange(0, dim, 2, dtype=jnp.float32) / dim))
    t = jnp.arange(seq_len, dtype=jnp.float32)
    freqs = jnp.outer(t, inv_freq)                      # (S, dim/2)
    emb = jnp.concatenate([freqs, freqs], axis=-1)      # (S, dim)
    return jnp.cos(emb), jnp.sin(emb)


def rotate_half(x):
    half = x.shape[-1] // 2
    return jnp.concatenate([-x[..., half:], x[..., :half]], axis=-1)


def apply_rotary_pos_emb(q, k, cos, sin, position_ids):
    cos = cos[position_ids][:, None, :, :]
    sin = sin[position_ids][:, None, :, :]
    q_embed = q * cos + rotate_half(q) * sin
    k_embed = k * cos + rotate_half(k) * sin
    return q_embed, k_embed


# ----------------------------- forward ---------------------------------------
def gpt_neox_attention(hidden_states, attention_mask, position_ids, params):
    B, S, H = hidden_states.shape
    D, nH, rot = HEAD_SIZE, NUM_HEADS, ROTARY_NDIMS

    x2d = hidden_states.reshape(B * S, H)

    # ---- wrapper-side weight preprocessing (layout plumbing) ----------------
    # de-interleave per-head [q|k|v] columns into head-major Q/K/V slabs
    h_idx = jnp.arange(nH)[:, None]
    d_idx = jnp.arange(D)[None, :]
    q_cols = (h_idx * 3 * D + d_idx).reshape(-1)
    k_cols = (h_idx * 3 * D + D + d_idx).reshape(-1)
    v_cols = (h_idx * 3 * D + 2 * D + d_idx).reshape(-1)

    Wqkv = params["qkv_w_t"]
    bqkv = params["qkv_b"]
    Wq, Wk, Wv = Wqkv[:, q_cols], Wqkv[:, k_cols], Wqkv[:, v_cols]
    bq, bk, bv = bqkv[q_cols], bqkv[k_cols], bqkv[v_cols]

    # rotate_half on the rotary lanes as a block-diagonal (H, H) matrix
    half = rot // 2
    rotm = jnp.zeros((D, D), jnp.float32)
    rotm = rotm.at[half:rot, :half].set(-jnp.eye(half, dtype=jnp.float32))
    rotm = rotm.at[:half, half:rot].set(jnp.eye(half, dtype=jnp.float32))
    rotm_all = jnp.kron(jnp.eye(nH, dtype=jnp.float32), rotm)          # (H, H)

    nf = jnp.float32(NORM_FACTOR)
    w_aug = jnp.concatenate(
        [Wq * nf, Wk, Wv, (Wq @ rotm_all) * nf, Wk @ rotm_all], axis=1)  # (H, 5H)
    b_aug = jnp.concatenate(
        [bq * nf, bk, bv, (bq @ rotm_all) * nf, bk @ rotm_all]).reshape(1, 5 * H)

    # rotary tables gathered per position, padded to head width, tiled per head
    cos, sin = rotary_cos_sin(S, rot, ROTARY_BASE)                    # (S, rot)
    cos_g = cos[position_ids]                                         # (B, S, rot)
    sin_g = sin[position_ids]
    cos_head = jnp.concatenate(
        [cos_g, jnp.ones((B, S, D - rot), jnp.float32)], axis=-1)     # (B, S, D)
    sin_head = jnp.concatenate(
        [sin_g, jnp.zeros((B, S, D - rot), jnp.float32)], axis=-1)
    cos_full = jnp.tile(cos_head, (1, 1, nH)).reshape(B * S, H)
    sin_full = jnp.tile(sin_head, (1, 1, nH)).reshape(B * S, H)

    # combined additive bias: causal fill + HF additive attention mask
    causal = jnp.tril(jnp.ones((S, S), dtype=bool))
    causal_bias = jnp.where(causal, 0.0, MASK_VALUE).astype(jnp.float32)
    bias = causal_bias[None, :, :] + attention_mask.reshape(B, 1, S)   # (B, S, S)
    bias2d = bias.reshape(B * S, S)

    out2d, w2d = pl.pallas_call(
        _fused_attention_kernel,
        out_shape=(
            jax.ShapeDtypeStruct((B * S, H), hidden_states.dtype),     # attn_output
            jax.ShapeDtypeStruct((B * S, nH * S), jnp.float32),        # attn_weights
        ),
        grid=(1,),
        in_specs=[
            pl.BlockSpec((B * S, H), lambda i: (0, 0)),        # hidden states
            pl.BlockSpec((H, 5 * H), lambda i: (0, 0)),        # augmented qkv weight
            pl.BlockSpec((1, 5 * H), lambda i: (0, 0)),        # augmented qkv bias
            pl.BlockSpec((B * S, H), lambda i: (0, 0)),        # cos table (padded, tiled)
            pl.BlockSpec((B * S, H), lambda i: (0, 0)),        # sin table (padded, tiled)
            pl.BlockSpec((B * S, S), lambda i: (0, 0)),        # combined additive bias
            pl.BlockSpec((H, H), lambda i: (0, 0)),            # dense weight (in,out)
            pl.BlockSpec((1, H), lambda i: (0, 0)),            # dense bias
        ],
        out_specs=(
            pl.BlockSpec((B * S, H), lambda i: (0, 0)),
            pl.BlockSpec((B * S, nH * S), lambda i: (0, 0)),
        ),
        scratch_shapes=[pltpu.VMEM((B * S, H), jnp.float32)],  # merged-head context
        compiler_params=pltpu.CompilerParams(
            dimension_semantics=("arbitrary",)),
    )(x2d, w_aug, b_aug, cos_full, sin_full, bias2d,
      params["dense_w_t"], params["dense_b"].reshape(1, H))

    attn_out = out2d.reshape(B, S, H)
    attn_w = w2d.reshape(B, S, nH, S).transpose(0, 2, 1, 3)    # (B, nH, S, S)
    return attn_out, attn_w


# ----------------------- pure-JAX reference (for check) ----------------------
def reference(hidden_states, attention_mask, position_ids, params):
    B, S, H = hidden_states.shape
    qkv = hidden_states.reshape(B * S, H) @ params["qkv_w_t"] + params["qkv_b"]
    qkv = qkv.reshape(B, S, NUM_HEADS, 3 * HEAD_SIZE)
    q = qkv[..., :HEAD_SIZE].transpose(0, 2, 1, 3)
    k = qkv[..., HEAD_SIZE:2 * HEAD_SIZE].transpose(0, 2, 1, 3)
    v = qkv[..., 2 * HEAD_SIZE:].transpose(0, 2, 1, 3)
    q_rot, q_pass = q[..., :ROTARY_NDIMS], q[..., ROTARY_NDIMS:]
    k_rot, k_pass = k[..., :ROTARY_NDIMS], k[..., ROTARY_NDIMS:]
    cos, sin = rotary_cos_sin(S, ROTARY_NDIMS, ROTARY_BASE)
    q_rot, k_rot = apply_rotary_pos_emb(q_rot, k_rot, cos, sin, position_ids)
    q = jnp.concatenate([q_rot, q_pass], axis=-1)
    k = jnp.concatenate([k_rot, k_pass], axis=-1)
    s = jnp.einsum("bhqd,bhkd->bhqk", q, k) * NORM_FACTOR
    causal = jnp.tril(jnp.ones((S, S), dtype=bool))[None, None]
    s = jnp.where(causal, s, MASK_VALUE)
    s = s + attention_mask
    w = jax.nn.softmax(s, axis=-1)
    o = jnp.einsum("bhqk,bhkd->bhqd", w, v)
    o = o.transpose(0, 2, 1, 3).reshape(B, S, H)
    o = o.reshape(B * S, H) @ params["dense_w_t"] + params["dense_b"]
    return o.reshape(B, S, H), w


# ------------------------------ main -----------------------------------------
if __name__ == "__main__":
    key = jax.random.PRNGKey(0)
    k0, k1, k2, k3, k4, k5 = jax.random.split(key, 6)

    # deterministic parameter init (shapes from nn.Linear in __init__)
    params = {
        "qkv_w_t": (jax.random.normal(k0, (HIDDEN, 3 * HIDDEN), jnp.float32)
                    * (1.0 / math.sqrt(HIDDEN))),
        "qkv_b": jax.random.normal(k1, (3 * HIDDEN,), jnp.float32) * 0.02,
        "dense_w_t": (jax.random.normal(k2, (HIDDEN, HIDDEN), jnp.float32)
                      * (1.0 / math.sqrt(HIDDEN))),
        "dense_b": jax.random.normal(k3, (HIDDEN,), jnp.float32) * 0.02,
    }

    hidden_states = jax.random.normal(k4, (BATCH, SEQ, HIDDEN), jnp.float32)
    # additive attention mask (as HF passes it): zeros = fully visible
    attention_mask = jnp.zeros((BATCH, 1, 1, SEQ), jnp.float32)
    position_ids = jnp.broadcast_to(jnp.arange(SEQ, dtype=jnp.int32)[None, :],
                                    (BATCH, SEQ))

    attn_out, attn_w = gpt_neox_attention(hidden_states, attention_mask,
                                          position_ids, params)
    attn_out = jax.block_until_ready(attn_out)
    attn_w = jax.block_until_ready(attn_w)

    ref_out, ref_w = reference(hidden_states, attention_mask, position_ids, params)
    assert jnp.allclose(attn_out, ref_out, rtol=2e-2, atol=2e-2)
    assert jnp.allclose(attn_w, ref_w, rtol=2e-2, atol=2e-2)

    print("KERNEL_OK")
</pallas_src>

<mosaic_0001>
module attributes {stable_mosaic.version = 11 : i64} {
  func.func @_fused_attention_kernel(%arg0: i32, %arg1: memref<16x32xf32, #tpu.memory_space<vmem>>, %arg2: memref<32x160xf32, #tpu.memory_space<vmem>>, %arg3: memref<1x160xf32, #tpu.memory_space<vmem>>, %arg4: memref<16x32xf32, #tpu.memory_space<vmem>>, %arg5: memref<16x32xf32, #tpu.memory_space<vmem>>, %arg6: memref<16x8xf32, #tpu.memory_space<vmem>>, %arg7: memref<32x32xf32, #tpu.memory_space<vmem>>, %arg8: memref<1x32xf32, #tpu.memory_space<vmem>>, %arg9: memref<16x32xf32, #tpu.memory_space<vmem>>, %arg10: memref<16x32xf32, #tpu.memory_space<vmem>>, %arg11: memref<16x32xf32, #tpu.memory_space<vmem>>) attributes {dimension_semantics = [#tpu.dimension_semantics<arbitrary>], iteration_bounds = array<i64: 1>, scalar_prefetch = 0 : i64, scratch_operands = 1 : i64, tpu.core_type = #tpu.core_type<tc>, window_params = [{pipeline_mode = #tpu.pipeline_mode<synchronous>, transform_indices = @transform_0, window_bounds = array<i64: 16, 32>}, {pipeline_mode = #tpu.pipeline_mode<synchronous>, transform_indices = @transform_1, window_bounds = array<i64: 32, 160>}, {pipeline_mode = #tpu.pipeline_mode<synchronous>, transform_indices = @transform_2, window_bounds = array<i64: 1, 160>}, {pipeline_mode = #tpu.pipeline_mode<synchronous>, transform_indices = @transform_3, window_bounds = array<i64: 16, 32>}, {pipeline_mode = #tpu.pipeline_mode<synchronous>, transform_indices = @transform_4, window_bounds = array<i64: 16, 32>}, {pipeline_mode = #tpu.pipeline_mode<synchronous>, transform_indices = @transform_5, window_bounds = array<i64: 16, 8>}, {pipeline_mode = #tpu.pipeline_mode<synchronous>, transform_indices = @transform_6, window_bounds = array<i64: 32, 32>}, {pipeline_mode = #tpu.pipeline_mode<synchronous>, transform_indices = @transform_7, window_bounds = array<i64: 1, 32>}, {pipeline_mode = #tpu.pipeline_mode<synchronous>, transform_indices = @transform_8, window_bounds = array<i64: 16, 32>}, {pipeline_mode = #tpu.pipeline_mode<synchronous>, transform_indices = @transform_9, window_bounds = array<i64: 16, 32>}]} {
    %c0 = arith.constant 0 : index
    %c0_0 = arith.constant 0 : index
    %0 = vector.load %arg1[%c0, %c0_0] : memref<16x32xf32, #tpu.memory_space<vmem>>, vector<16x32xf32>
    %c0_1 = arith.constant 0 : index
    %c0_2 = arith.constant 0 : index
    %1 = vector.load %arg2[%c0_1, %c0_2] : memref<32x160xf32, #tpu.memory_space<vmem>>, vector<32x160xf32>
    %cst = arith.constant dense<0.000000e+00> : vector<16x160xf32>
    %2 = tpu.matmul %0, %1, %cst {dimension_numbers = #tpu.dot_dimension_numbers<[1], [0], [0], [1], [0, 0, 1, 1], [], []>} : vector<16x32xf32>, vector<32x160xf32>, vector<16x160xf32> -> vector<16x160xf32>
    %c0_3 = arith.constant 0 : index
    %c0_4 = arith.constant 0 : index
    %3 = vector.load %arg3[%c0_3, %c0_4] : memref<1x160xf32, #tpu.memory_space<vmem>>, vector<1x160xf32>
    %4 = vector.broadcast %3 : vector<1x160xf32> to vector<16x160xf32>
    %5 = arith.addf %2, %4 : vector<16x160xf32>
    %c0_5 = arith.constant 0 : index
    %c0_6 = arith.constant 0 : index
    %6 = vector.load %arg4[%c0_5, %c0_6] : memref<16x32xf32, #tpu.memory_space<vmem>>, vector<16x32xf32>
    %c0_7 = arith.constant 0 : index
    %c0_8 = arith.constant 0 : index
    %7 = vector.load %arg5[%c0_7, %c0_8] : memref<16x32xf32, #tpu.memory_space<vmem>>, vector<16x32xf32>
    %8 = vector.extract_strided_slice %5 {offsets = [0, 0], sizes = [16, 32], strides = [1, 1]} : vector<16x160xf32> to vector<16x32xf32>
    %9 = arith.mulf %8, %6 : vector<16x32xf32>
    %10 = vector.extract_strided_slice %5 {offsets = [0, 96], sizes = [16, 32], strides = [1, 1]} : vector<16x160xf32> to vector<16x32xf32>
    %11 = arith.mulf %10, %7 : vector<16x32xf32>
    %12 = arith.addf %9, %11 : vector<16x32xf32>
    %13 = vector.extract_strided_slice %5 {offsets = [0, 32], sizes = [16, 32], strides = [1, 1]} : vector<16x160xf32> to vector<16x32xf32>
    %14 = arith.mulf %13, %6 : vector<16x32xf32>
    %15 = vector.extract_strided_slice %5 {offsets = [0, 128], sizes = [16, 32], strides = [1, 1]} : vector<16x160xf32> to vector<16x32xf32>
    %16 = arith.mulf %15, %7 : vector<16x32xf32>
    %17 = arith.addf %14, %16 : vector<16x32xf32>
    %18 = vector.extract_strided_slice %5 {offsets = [0, 64], sizes = [16, 32], strides = [1, 1]} : vector<16x160xf32> to vector<16x32xf32>
    %c0_9 = arith.constant 0 : index
    %c0_10 = arith.constant 0 : index
    %19 = vector.load %arg6[%c0_9, %c0_10] : memref<16x8xf32, #tpu.memory_space<vmem>>, vector<8x8xf32>
    %20 = vector.extract_strided_slice %12 {offsets = [0, 0], sizes = [8, 8], strides = [1, 1]} : vector<16x32xf32> to vector<8x8xf32>
    %21 = vector.extract_strided_slice %17 {offsets = [0, 0], sizes = [8, 8], strides = [1, 1]} : vector<16x32xf32> to vector<8x8xf32>
    %22 = vector.extract_strided_slice %18 {offsets = [0, 0], sizes = [8, 8], strides = [1, 1]} : vector<16x32xf32> to vector<8x8xf32>
    %cst_11 = arith.constant dense<0.000000e+00> : vector<8x8xf32>
    %23 = tpu.matmul %20, %21, %cst_11 {dimension_numbers = #tpu.dot_dimension_numbers<[1], [1], [0], [0], [0, 0, 1, 0], [], []>} : vector<8x8xf32>, vector<8x8xf32>, vector<8x8xf32> -> vector<8x8xf32>
    %24 = arith.addf %23, %19 : vector<8x8xf32>
    %cst_12 = arith.constant dense<0xFF800000> : vector<8xf32>
    %25 = vector.multi_reduction <maximumf>, %24, %cst_12 [1] : vector<8x8xf32> to vector<8xf32>
    %26 = vector.shape_cast %25 : vector<8xf32> to vector<8x1xf32>
    %27 = vector.broadcast %26 : vector<8x1xf32> to vector<8x8xf32>
    %28 = arith.subf %24, %27 : vector<8x8xf32>
    %29 = math.exp %28 : vector<8x8xf32>
    %cst_13 = arith.constant dense<0.000000e+00> : vector<8xf32>
    %30 = vector.multi_reduction <add>, %29, %cst_13 [1] : vector<8x8xf32> to vector<8xf32>
    %31 = vector.shape_cast %30 : vector<8xf32> to vector<8x1xf32>
    %32 = tpu.reciprocal %31 {approx = true} : vector<8x1xf32> -> vector<8x1xf32>
    %33 = vector.broadcast %32 : vector<8x1xf32> to vector<8x8xf32>
    %34 = arith.mulf %29, %33 : vector<8x8xf32>
    %c0_14 = arith.constant 0 : index
    %c0_15 = arith.constant 0 : index
    %35 = vector.load %arg10[%c0_14, %c0_15] : memref<16x32xf32, #tpu.memory_space<vmem>>, vector<8x8xf32>
    tpu.vector_store %arg10[%c0_14, %c0_15], %34 {strides = array<i32>} : memref<16x32xf32, #tpu.memory_space<vmem>>, vector<8x8xf32>,
    %cst_16 = arith.constant dense<0.000000e+00> : vector<8x8xf32>
    %36 = tpu.matmul %34, %22, %cst_16 {dimension_numbers = #tpu.dot_dimension_numbers<[1], [0], [0], [1], [0, 0, 1, 1], [], []>} : vector<8x8xf32>, vector<8x8xf32>, vector<8x8xf32> -> vector<8x8xf32>
    %c0_17 = arith.constant 0 : index
    %c0_18 = arith.constant 0 : index
    %37 = vector.load %arg11[%c0_17, %c0_18] : memref<16x32xf32, #tpu.memory_space<vmem>>, vector<8x8xf32>
    tpu.vector_store %arg11[%c0_17, %c0_18], %36 {strides = array<i32>} : memref<16x32xf32, #tpu.memory_space<vmem>>, vector<8x8xf32>,
    %38 = vector.extract_strided_slice %12 {offsets = [0, 8], sizes = [8, 8], strides = [1, 1]} : vector<16x32xf32> to vector<8x8xf32>
    %39 = vector.extract_strided_slice %17 {offsets = [0, 8], sizes = [8, 8], strides = [1, 1]} : vector<16x32xf32> to vector<8x8xf32>
    %40 = vector.extract_strided_slice %18 {offsets = [0, 8], sizes = [8, 8], strides = [1, 1]} : vector<16x32xf32> to vector<8x8xf32>
    %cst_19 = arith.constant dense<0.000000e+00> : vector<8x8xf32>
    %41 = tpu.matmul %38, %39, %cst_19 {dimension_numbers = #tpu.dot_dimension_numbers<[1], [1], [0], [0], [0, 0, 1, 0], [], []>} : vector<8x8xf32>, vector<8x8xf32>, vector<8x8xf32> -> vector<8x8xf32>
    %42 = arith.addf %41, %19 : vector<8x8xf32>
    %cst_20 = arith.constant dense<0xFF800000> : vector<8xf32>
    %43 = vector.multi_reduction <maximumf>, %42, %cst_20 [1] : vector<8x8xf32> to vector<8xf32>
    %44 = vector.shape_cast %43 : vector<8xf32> to vector<8x1xf32>
    %45 = vector.broadcast %44 : vector<8x1xf32> to vector<8x8xf32>
    %46 = arith.subf %42, %45 : vector<8x8xf32>
    %47 = math.exp %46 : vector<8x8xf32>
    %cst_21 = arith.constant dense<0.000000e+00> : vector<8xf32>
    %48 = vector.multi_reduction <add>, %47, %cst_21 [1] : vector<8x8xf32> to vector<8xf32>
    %49 = vector.shape_cast %48 : vector<8xf32> to vector<8x1xf32>
    %50 = tpu.reciprocal %49 {approx = true} : vector<8x1xf32> -> vector<8x1xf32>
    %51 = vector.broadcast %50 : vector<8x1xf32> to vector<8x8xf32>
    %52 = arith.mulf %47, %51 : vector<8x8xf32>
    %c0_22 = arith.constant 0 : index
    %c8 = arith.constant 8 : index
    %53 = vector.load %arg10[%c0_22, %c8] : memref<16x32xf32, #tpu.memory_space<vmem>>, vector<8x8xf32>
    tpu.vector_store %arg10[%c0_22, %c8], %52 {strides = array<i32>} : memref<16x32xf32, #tpu.memory_space<vmem>>, vector<8x8xf32>,
    %cst_23 = arith.constant dense<0.000000e+00> : vector<8x8xf32>
    %54 = tpu.matmul %52, %40, %cst_23 {dimension_numbers = #tpu.dot_dimension_numbers<[1], [0], [0], [1], [0, 0, 1, 1], [], []>} : vector<8x8xf32>, vector<8x8xf32>, vector<8x8xf32> -> vector<8x8xf32>
    %c0_24 = arith.constant 0 : index
    %c8_25 = arith.constant 8 : index
    %55 = vector.load %arg11[%c0_24, %c8_25] : memref<16x32xf32, #tpu.memory_space<vmem>>, vector<8x8xf32>
    tpu.vector_store %arg11[%c0_24, %c8_25], %54 {strides = array<i32>} : memref<16x32xf32, #tpu.memory_space<vmem>>, vector<8x8xf32>,
    %56 = vector.extract_strided_slice %12 {offsets = [0, 16], sizes = [8, 8], strides = [1, 1]} : vector<16x32xf32> to vector<8x8xf32>
    %57 = vector.extract_strided_slice %17 {offsets = [0, 16], sizes = [8, 8], strides = [1, 1]} : vector<16x32xf32> to vector<8x8xf32>
    %58 = vector.extract_strided_slice %18 {offsets = [0, 16], sizes = [8, 8], strides = [1, 1]} : vector<16x32xf32> to vector<8x8xf32>
    %cst_26 = arith.constant dense<0.000000e+00> : vector<8x8xf32>
    %59 = tpu.matmul %56, %57, %cst_26 {dimension_numbers = #tpu.dot_dimension_numbers<[1], [1], [0], [0], [0, 0, 1, 0], [], []>} : vector<8x8xf32>, vector<8x8xf32>, vector<8x8xf32> -> vector<8x8xf32>
    %60 = arith.addf %59, %19 : vector<8x8xf32>
    %cst_27 = arith.constant dense<0xFF800000> : vector<8xf32>
    %61 = vector.multi_reduction <maximumf>, %60, %cst_27 [1] : vector<8x8xf32> to vector<8xf32>
    %62 = vector.shape_cast %61 : vector<8xf32> to vector<8x1xf32>
    %63 = vector.broadcast %62 : vector<8x1xf32> to vector<8x8xf32>
    %64 = arith.subf %60, %63 : vector<8x8xf32>
    %65 = math.exp %64 : vector<8x8xf32>
    %cst_28 = arith.constant dense<0.000000e+00> : vector<8xf32>
    %66 = vector.multi_reduction <add>, %65, %cst_28 [1] : vector<8x8xf32> to vector<8xf32>
    %67 = vector.shape_cast %66 : vector<8xf32> to vector<8x1xf32>
    %68 = tpu.reciprocal %67 {approx = true} : vector<8x1xf32> -> vector<8x1xf32>
    %69 = vector.broadcast %68 : vector<8x1xf32> to vector<8x8xf32>
    %70 = arith.mulf %65, %69 : vector<8x8xf32>
    %c0_29 = arith.constant 0 : index
    %c16 = arith.constant 16 : index
    %71 = vector.load %arg10[%c0_29, %c16] : memref<16x32xf32, #tpu.memory_space<vmem>>, vector<8x8xf32>
    tpu.vector_store %arg10[%c0_29, %c16], %70 {strides = array<i32>} : memref<16x32xf32, #tpu.memory_space<vmem>>, vector<8x8xf32>,
    %cst_30 = arith.constant dense<0.000000e+00> : vector<8x8xf32>
    %72 = tpu.matmul %70, %58, %cst_30 {dimension_numbers = #tpu.dot_dimension_numbers<[1], [0], [0], [1], [0, 0, 1, 1], [], []>} : vector<8x8xf32>, vector<8x8xf32>, vector<8x8xf32> -> vector<8x8xf32>
    %c0_31 = arith.constant 0 : index
    %c16_32 = arith.constant 16 : index
    %73 = vector.load %arg11[%c0_31, %c16_32] : memref<16x32xf32, #tpu.memory_space<vmem>>, vector<8x8xf32>
    tpu.vector_store %arg11[%c0_31, %c16_32], %72 {strides = array<i32>} : memref<16x32xf32, #tpu.memory_space<vmem>>, vector<8x8xf32>,
    %74 = vector.extract_strided_slice %12 {offsets = [0, 24], sizes = [8, 8], strides = [1, 1]} : vector<16x32xf32> to vector<8x8xf32>
    %75 = vector.extract_strided_slice %17 {offsets = [0, 24], sizes = [8, 8], strides = [1, 1]} : vector<16x32xf32> to vector<8x8xf32>
    %76 = vector.extract_strided_slice %18 {offsets = [0, 24], sizes = [8, 8], strides = [1, 1]} : vector<16x32xf32> to vector<8x8xf32>
    %cst_33 = arith.constant dense<0.000000e+00> : vector<8x8xf32>
    %77 = tpu.matmul %74, %75, %cst_33 {dimension_numbers = #tpu.dot_dimension_numbers<[1], [1], [0], [0], [0, 0, 1, 0], [], []>} : vector<8x8xf32>, vector<8x8xf32>, vector<8x8xf32> -> vector<8x8xf32>
    %78 = arith.addf %77, %19 : vector<8x8xf32>
    %cst_34 = arith.constant dense<0xFF800000> : vector<8xf32>
    %79 = vector.multi_reduction <maximumf>, %78, %cst_34 [1] : vector<8x8xf32> to vector<8xf32>
    %80 = vector.shape_cast %79 : vector<8xf32> to vector<8x1xf32>
    %81 = vector.broadcast %80 : vector<8x1xf32> to vector<8x8xf32>
    %82 = arith.subf %78, %81 : vector<8x8xf32>
    %83 = math.exp %82 : vector<8x8xf32>
    %cst_35 = arith.constant dense<0.000000e+00> : vector<8xf32>
    %84 = vector.multi_reduction <add>, %83, %cst_35 [1] : vector<8x8xf32> to vector<8xf32>
    %85 = vector.shape_cast %84 : vector<8xf32> to vector<8x1xf32>
    %86 = tpu.reciprocal %85 {approx = true} : vector<8x1xf32> -> vector<8x1xf32>
    %87 = vector.broadcast %86 : vector<8x1xf32> to vector<8x8xf32>
    %88 = arith.mulf %83, %87 : vector<8x8xf32>
    %c0_36 = arith.constant 0 : index
    %c24 = arith.constant 24 : index
    %89 = vector.load %arg10[%c0_36, %c24] : memref<16x32xf32, #tpu.memory_space<vmem>>, vector<8x8xf32>
    tpu.vector_store %arg10[%c0_36, %c24], %88 {strides = array<i32>} : memref<16x32xf32, #tpu.memory_space<vmem>>, vector<8x8xf32>,
    %cst_37 = arith.constant dense<0.000000e+00> : vector<8x8xf32>
    %90 = tpu.matmul %88, %76, %cst_37 {dimension_numbers = #tpu.dot_dimension_numbers<[1], [0], [0], [1], [0, 0, 1, 1], [], []>} : vector<8x8xf32>, vector<8x8xf32>, vector<8x8xf32> -> vector<8x8xf32>
    %c0_38 = arith.constant 0 : index
    %c24_39 = arith.constant 24 : index
    %91 = vector.load %arg11[%c0_38, %c24_39] : memref<16x32xf32, #tpu.memory_space<vmem>>, vector<8x8xf32>
    tpu.vector_store %arg11[%c0_38, %c24_39], %90 {strides = array<i32>} : memref<16x32xf32, #tpu.memory_space<vmem>>, vector<8x8xf32>,
    %c8_40 = arith.constant 8 : index
    %c0_41 = arith.constant 0 : index
    %92 = vector.load %arg6[%c8_40, %c0_41] : memref<16x8xf32, #tpu.memory_space<vmem>>, vector<8x8xf32>
    %93 = vector.extract_strided_slice %12 {offsets = [8, 0], sizes = [8, 8], strides = [1, 1]} : vector<16x32xf32> to vector<8x8xf32>
    %94 = vector.extract_strided_slice %17 {offsets = [8, 0], sizes = [8, 8], strides = [1, 1]} : vector<16x32xf32> to vector<8x8xf32>
    %95 = vector.extract_strided_slice %18 {offsets = [8, 0], sizes = [8, 8], strides = [1, 1]} : vector<16x32xf32> to vector<8x8xf32>
    %cst_42 = arith.constant dense<0.000000e+00> : vector<8x8xf32>
    %96 = tpu.matmul %93, %94, %cst_42 {dimension_numbers = #tpu.dot_dimension_numbers<[1], [1], [0], [0], [0, 0, 1, 0], [], []>} : vector<8x8xf32>, vector<8x8xf32>, vector<8x8xf32> -> vector<8x8xf32>
    %97 = arith.addf %96, %92 : vector<8x8xf32>
    %cst_43 = arith.constant dense<0xFF800000> : vector<8xf32>
    %98 = vector.multi_reduction <maximumf>, %97, %cst_43 [1] : vector<8x8xf32> to vector<8xf32>
    %99 = vector.shape_cast %98 : vector<8xf32> to vector<8x1xf32>
    %100 = vector.broadcast %99 : vector<8x1xf32> to vector<8x8xf32>
    %101 = arith.subf %97, %100 : vector<8x8xf32>
    %102 = math.exp %101 : vector<8x8xf32>
    %cst_44 = arith.constant dense<0.000000e+00> : vector<8xf32>
    %103 = vector.multi_reduction <add>, %102, %cst_44 [1] : vector<8x8xf32> to vector<8xf32>
    %104 = vector.shape_cast %103 : vector<8xf32> to vector<8x1xf32>
    %105 = tpu.reciprocal %104 {approx = true} : vector<8x1xf32> -> vector<8x1xf32>
    %106 = vector.broadcast %105 : vector<8x1xf32> to vector<8x8xf32>
    %107 = arith.mulf %102, %106 : vector<8x8xf32>
    %c8_45 = arith.constant 8 : index
    %c0_46 = arith.constant 0 : index
    %108 = vector.load %arg10[%c8_45, %c0_46] : memref<16x32xf32, #tpu.memory_space<vmem>>, vector<8x8xf32>
    tpu.vector_store %arg10[%c8_45, %c0_46], %107 {strides = array<i32>} : memref<16x32xf32, #tpu.memory_space<vmem>>, vector<8x8xf32>,
    %cst_47 = arith.constant dense<0.000000e+00> : vector<8x8xf32>
    %109 = tpu.matmul %107, %95, %cst_47 {dimension_numbers = #tpu.dot_dimension_numbers<[1], [0], [0], [1], [0, 0, 1, 1], [], []>} : vector<8x8xf32>, vector<8x8xf32>, vector<8x8xf32> -> vector<8x8xf32>
    %c8_48 = arith.constant 8 : index
    %c0_49 = arith.constant 0 : index
    %110 = vector.load %arg11[%c8_48, %c0_49] : memref<16x32xf32, #tpu.memory_space<vmem>>, vector<8x8xf32>
    tpu.vector_store %arg11[%c8_48, %c0_49], %109 {strides = array<i32>} : memref<16x32xf32, #tpu.memory_space<vmem>>, vector<8x8xf32>,
    %111 = vector.extract_strided_slice %12 {offsets = [8, 8], sizes = [8, 8], strides = [1, 1]} : vector<16x32xf32> to vector<8x8xf32>
    %112 = vector.extract_strided_slice %17 {offsets = [8, 8], sizes = [8, 8], strides = [1, 1]} : vector<16x32xf32> to vector<8x8xf32>
    %113 = vector.extract_strided_slice %18 {offsets = [8, 8], sizes = [8, 8], strides = [1, 1]} : vector<16x32xf32> to vector<8x8xf32>
    %cst_50 = arith.constant dense<0.000000e+00> : vector<8x8xf32>
    %114 = tpu.matmul %111, %112, %cst_50 {dimension_numbers = #tpu.dot_dimension_numbers<[1], [1], [0], [0], [0, 0, 1, 0], [], []>} : vector<8x8xf32>, vector<8x8xf32>, vector<8x8xf32> -> vector<8x8xf32>
    %115 = arith.addf %114, %92 : vector<8x8xf32>
    %cst_51 = arith.constant dense<0xFF800000> : vector<8xf32>
    %116 = vector.multi_reduction <maximumf>, %115, %cst_51 [1] : vector<8x8xf32> to vector<8xf32>
    %117 = vector.shape_cast %116 : vector<8xf32> to vector<8x1xf32>
    %118 = vector.broadcast %117 : vector<8x1xf32> to vector<8x8xf32>
    %119 = arith.subf %115, %118 : vector<8x8xf32>
    %120 = math.exp %119 : vector<8x8xf32>
    %cst_52 = arith.constant dense<0.000000e+00> : vector<8xf32>
    %121 = vector.multi_reduction <add>, %120, %cst_52 [1] : vector<8x8xf32> to vector<8xf32>
    %122 = vector.shape_cast %121 : vector<8xf32> to vector<8x1xf32>
    %123 = tpu.reciprocal %122 {approx = true} : vector<8x1xf32> -> vector<8x1xf32>
    %124 = vector.broadcast %123 : vector<8x1xf32> to vector<8x8xf32>
    %125 = arith.mulf %120, %124 : vector<8x8xf32>
    %c8_53 = arith.constant 8 : index
    %c8_54 = arith.constant 8 : index
    %126 = vector.load %arg10[%c8_53, %c8_54] : memref<16x32xf32, #tpu.memory_space<vmem>>, vector<8x8xf32>
    tpu.vector_store %arg10[%c8_53, %c8_54], %125 {strides = array<i32>} : memref<16x32xf32, #tpu.memory_space<vmem>>, vector<8x8xf32>,
    %cst_55 = arith.constant dense<0.000000e+00> : vector<8x8xf32>
    %127 = tpu.matmul %125, %113, %cst_55 {dimension_numbers = #tpu.dot_dimension_numbers<[1], [0], [0], [1], [0, 0, 1, 1], [], []>} : vector<8x8xf32>, vector<8x8xf32>, vector<8x8xf32> -> vector<8x8xf32>
    %c8_56 = arith.constant 8 : index
    %c8_57 = arith.constant 8 : index
    %128 = vector.load %arg11[%c8_56, %c8_57] : memref<16x32xf32, #tpu.memory_space<vmem>>, vector<8x8xf32>
    tpu.vector_store %arg11[%c8_56, %c8_57], %127 {strides = array<i32>} : memref<16x32xf32, #tpu.memory_space<vmem>>, vector<8x8xf32>,
    %129 = vector.extract_strided_slice %12 {offsets = [8, 16], sizes = [8, 8], strides = [1, 1]} : vector<16x32xf32> to vector<8x8xf32>
    %130 = vector.extract_strided_slice %17 {offsets = [8, 16], sizes = [8, 8], strides = [1, 1]} : vector<16x32xf32> to vector<8x8xf32>
    %131 = vector.extract_strided_slice %18 {offsets = [8, 16], sizes = [8, 8], strides = [1, 1]} : vector<16x32xf32> to vector<8x8xf32>
    %cst_58 = arith.constant dense<0.000000e+00> : vector<8x8xf32>
    %132 = tpu.matmul %129, %130, %cst_58 {dimension_numbers = #tpu.dot_dimension_numbers<[1], [1], [0], [0], [0, 0, 1, 0], [], []>} : vector<8x8xf32>, vector<8x8xf32>, vector<8x8xf32> -> vector<8x8xf32>
    %133 = arith.addf %132, %92 : vector<8x8xf32>
    %cst_59 = arith.constant dense<0xFF800000> : vector<8xf32>
    %134 = vector.multi_reduction <maximumf>, %133, %cst_59 [1] : vector<8x8xf32> to vector<8xf32>
    %135 = vector.shape_cast %134 : vector<8xf32> to vector<8x1xf32>
    %136 = vector.broadcast %135 : vector<8x1xf32> to vector<8x8xf32>
    %137 = arith.subf %133, %136 : vector<8x8xf32>
    %138 = math.exp %137 : vector<8x8xf32>
    %cst_60 = arith.constant dense<0.000000e+00> : vector<8xf32>
    %139 = vector.multi_reduction <add>, %138, %cst_60 [1] : vector<8x8xf32> to vector<8xf32>
    %140 = vector.shape_cast %139 : vector<8xf32> to vector<8x1xf32>
    %141 = tpu.reciprocal %140 {approx = true} : vector<8x1xf32> -> vector<8x1xf32>
    %142 = vector.broadcast %141 : vector<8x1xf32> to vector<8x8xf32>
    %143 = arith.mulf %138, %142 : vector<8x8xf32>
    %c8_61 = arith.constant 8 : index
    %c16_62 = arith.constant 16 : index
    %144 = vector.load %arg10[%c8_61, %c16_62] : memref<16x32xf32, #tpu.memory_space<vmem>>, vector<8x8xf32>
    tpu.vector_store %arg10[%c8_61, %c16_62], %143 {strides = array<i32>} : memref<16x32xf32, #tpu.memory_space<vmem>>, vector<8x8xf32>,
    %cst_63 = arith.constant dense<0.000000e+00> : vector<8x8xf32>
    %145 = tpu.matmul %143, %131, %cst_63 {dimension_numbers = #tpu.dot_dimension_numbers<[1], [0], [0], [1], [0, 0, 1, 1], [], []>} : vector<8x8xf32>, vector<8x8xf32>, vector<8x8xf32> -> vector<8x8xf32>
    %c8_64 = arith.constant 8 : index
    %c16_65 = arith.constant 16 : index
    %146 = vector.load %arg11[%c8_64, %c16_65] : memref<16x32xf32, #tpu.memory_space<vmem>>, vector<8x8xf32>
    tpu.vector_store %arg11[%c8_64, %c16_65], %145 {strides = array<i32>} : memref<16x32xf32, #tpu.memory_space<vmem>>, vector<8x8xf32>,
    %147 = vector.extract_strided_slice %12 {offsets = [8, 24], sizes = [8, 8], strides = [1, 1]} : vector<16x32xf32> to vector<8x8xf32>
    %148 = vector.extract_strided_slice %17 {offsets = [8, 24], sizes = [8, 8], strides = [1, 1]} : vector<16x32xf32> to vector<8x8xf32>
    %149 = vector.extract_strided_slice %18 {offsets = [8, 24], sizes = [8, 8], strides = [1, 1]} : vector<16x32xf32> to vector<8x8xf32>
    %cst_66 = arith.constant dense<0.000000e+00> : vector<8x8xf32>
    %150 = tpu.matmul %147, %148, %cst_66 {dimension_numbers = #tpu.dot_dimension_numbers<[1], [1], [0], [0], [0, 0, 1, 0], [], []>} : vector<8x8xf32>, vector<8x8xf32>, vector<8x8xf32> -> vector<8x8xf32>
    %151 = arith.addf %150, %92 : vector<8x8xf32>
    %cst_67 = arith.constant dense<0xFF800000> : vector<8xf32>
    %152 = vector.multi_reduction <maximumf>, %151, %cst_67 [1] : vector<8x8xf32> to vector<8xf32>
    %153 = vector.shape_cast %152 : vector<8xf32> to vector<8x1xf32>
    %154 = vector.broadcast %153 : vector<8x1xf32> to vector<8x8xf32>
    %155 = arith.subf %151, %154 : vector<8x8xf32>
    %156 = math.exp %155 : vector<8x8xf32>
    %cst_68 = arith.constant dense<0.000000e+00> : vector<8xf32>
    %157 = vector.multi_reduction <add>, %156, %cst_68 [1] : vector<8x8xf32> to vector<8xf32>
    %158 = vector.shape_cast %157 : vector<8xf32> to vector<8x1xf32>
    %159 = tpu.reciprocal %158 {approx = true} : vector<8x1xf32> -> vector<8x1xf32>
    %160 = vector.broadcast %159 : vector<8x1xf32> to vector<8x8xf32>
    %161 = arith.mulf %156, %160 : vector<8x8xf32>
    %c8_69 = arith.constant 8 : index
    %c24_70 = arith.constant 24 : index
    %162 = vector.load %arg10[%c8_69, %c24_70] : memref<16x32xf32, #tpu.memory_space<vmem>>, vector<8x8xf32>
    tpu.vector_store %arg10[%c8_69, %c24_70], %161 {strides = array<i32>} : memref<16x32xf32, #tpu.memory_space<vmem>>, vector<8x8xf32>,
    %cst_71 = arith.constant dense<0.000000e+00> : vector<8x8xf32>
    %163 = tpu.matmul %161, %149, %cst_71 {dimension_numbers = #tpu.dot_dimension_numbers<[1], [0], [0], [1], [0, 0, 1, 1], [], []>} : vector<8x8xf32>, vector<8x8xf32>, vector<8x8xf32> -> vector<8x8xf32>
    %c8_72 = arith.constant 8 : index
    %c24_73 = arith.constant 24 : index
    %164 = vector.load %arg11[%c8_72, %c24_73] : memref<16x32xf32, #tpu.memory_space<vmem>>, vector<8x8xf32>
    tpu.vector_store %arg11[%c8_72, %c24_73], %163 {strides = array<i32>} : memref<16x32xf32, #tpu.memory_space<vmem>>, vector<8x8xf32>,
    %c0_74 = arith.constant 0 : index
    %c0_75 = arith.constant 0 : index
    %165 = vector.load %arg11[%c0_74, %c0_75] : memref<16x32xf32, #tpu.memory_space<vmem>>, vector<16x32xf32>
    %c0_76 = arith.constant 0 : index
    %c0_77 = arith.constant 0 : index
    %166 = vector.load %arg7[%c0_76, %c0_77] : memref<32x32xf32, #tpu.memory_space<vmem>>, vector<32x32xf32>
    %cst_78 = arith.constant dense<0.000000e+00> : vector<16x32xf32>
    %167 = tpu.matmul %165, %166, %cst_78 {dimension_numbers = #tpu.dot_dimension_numbers<[1], [0], [0], [1], [0, 0, 1, 1], [], []>} : vector<16x32xf32>, vector<32x32xf32>, vector<16x32xf32> -> vector<16x32xf32>
    %c0_79 = arith.constant 0 : index
    %c0_80 = arith.constant 0 : index
    %168 = vector.load %arg8[%c0_79, %c0_80] : memref<1x32xf32, #tpu.memory_space<vmem>>, vector<1x32xf32>
    %169 = vector.broadcast %168 : vector<1x32xf32> to vector<16x32xf32>
    %170 = arith.addf %167, %169 : vector<16x32xf32>
    %c0_81 = arith.constant 0 : index
    %c0_82 = arith.constant 0 : index
    %171 = vector.load %arg9[%c0_81, %c0_82] : memref<16x32xf32, #tpu.memory_space<vmem>>, vector<16x32xf32>
    tpu.vector_store %arg9[%c0_81, %c0_82], %170 {strides = array<i32>} : memref<16x32xf32, #tpu.memory_space<vmem>>, vector<16x32xf32>,
    return
  }
  func.func @transform_0(%arg0: i32) -> (i32, i32) {
    %c0_i32 = arith.constant 0 : i32
    %c0_i32_0 = arith.constant 0 : i32
    %c0_i32_1 = arith.constant 0 : i32
    return %c0_i32, %c0_i32_0 : i32, i32
  }
  func.func @transform_1(%arg0: i32) -> (i32, i32) {
    %c0_i32 = arith.constant 0 : i32
    %c0_i32_0 = arith.constant 0 : i32
    %c0_i32_1 = arith.constant 0 : i32
    return %c0_i32, %c0_i32_0 : i32, i32
  }
  func.func @transform_2(%arg0: i32) -> (i32, i32) {
    %c0_i32 = arith.constant 0 : i32
    %c0_i32_0 = arith.constant 0 : i32
    %c0_i32_1 = arith.constant 0 : i32
    return %c0_i32, %c0_i32_0 : i32, i32
  }
  func.func @transform_3(%arg0: i32) -> (i32, i32) {
    %c0_i32 = arith.constant 0 : i32
    %c0_i32_0 = arith.constant 0 : i32
    %c0_i32_1 = arith.constant 0 : i32
    return %c0_i32, %c0_i32_0 : i32, i32
  }
  func.func @transform_4(%arg0: i32) -> (i32, i32) {
    %c0_i32 = arith.constant 0 : i32
    %c0_i32_0 = arith.constant 0 : i32
    %c0_i32_1 = arith.constant 0 : i32
    return %c0_i32, %c0_i32_0 : i32, i32
  }
  func.func @transform_5(%arg0: i32) -> (i32, i32) {
    %c0_i32 = arith.constant 0 : i32
    %c0_i32_0 = arith.constant 0 : i32
    %c0_i32_1 = arith.constant 0 : i32
    return %c0_i32, %c0_i32_0 : i32, i32
  }
  func.func @transform_6(%arg0: i32) -> (i32, i32) {
    %c0_i32 = arith.constant 0 : i32
    %c0_i32_0 = arith.constant 0 : i32
    %c0_i32_1 = arith.constant 0 : i32
    return %c0_i32, %c0_i32_0 : i32, i32
  }
  func.func @transform_7(%arg0: i32) -> (i32, i32) {
    %c0_i32 = arith.constant 0 : i32
    %c0_i32_0 = arith.constant 0 : i32
    %c0_i32_1 = arith.constant 0 : i32
    return %c0_i32, %c0_i32_0 : i32, i32
  }
  func.func @transform_8(%arg0: i32) -> (i32, i32) {
    %c0_i32 = arith.constant 0 : i32
    %c0_i32_0 = arith.constant 0 : i32
    %c0_i32_1 = arith.constant 0 : i32
    return %c0_i32, %c0_i32_0 : i32, i32
  }
  func.func @transform_9(%arg0: i32) -> (i32, i32) {
    %c0_i32 = arith.constant 0 : i32
    %c0_i32_0 = arith.constant 0 : i32
    %c0_i32_1 = arith.constant 0 : i32
    return %c0_i32, %c0_i32_0 : i32, i32
  }
}

</mosaic_0001>

<llo_original>
// kernel: tpu_custom_call.1
$region0: #{tpu_custom_call.1}
  #allocation0 [shape = 'u32[]', space=smem, size = 0x4, offset = 0x4, fixed_abs, tag = 'smem constant byte address 0x4 - core index']
  #allocation1 [shape = 'u32[144,128]{1,0:T(1,128)}', space=vmem, size = 0x12000, scoped, tag = 'internal scratch']
  #allocation2 [shape = 'f32[16,32]{1,0:T(8,128)}', space=vmem, size = 0x2000, scoped, tag = 'scratch operand']
  %s0 = inlined_call_operand.hbm [shape: f32[16,32], index: 0, kind: input, shape index: {}]
  %s1 = inlined_call_operand.hbm [shape: f32[32,160], index: 1, kind: input, shape index: {}]
  %s2 = inlined_call_operand.vmem [shape: f32[1,160], index: 2, kind: input, shape index: {}]
  %s3 = inlined_call_operand.hbm [shape: f32[16,32], index: 3, kind: input, shape index: {}]
  %s4 = inlined_call_operand.hbm [shape: f32[16,32], index: 4, kind: input, shape index: {}]
  %s5 = inlined_call_operand.vmem [shape: f32[16,8], index: 5, kind: input, shape index: {}]
  %s6 = inlined_call_operand.vmem [shape: f32[32,32], index: 6, kind: input, shape index: {}]
  %s7 = inlined_call_operand.vmem [shape: f32[1,32], index: 7, kind: input, shape index: {}]
  %s8 = inlined_call_operand.hbm [shape: f32[16,32], index: 8, kind: output, shape index: {0}]
  %s9 = inlined_call_operand.hbm [shape: f32[16,32], index: 9, kind: output, shape index: {1}]
  %10 = xla_tuple %s8, %s9
  %s11 = sld [smem:[#allocation0]]
  $region66: #{tpu_custom_call.1} parent=0
    _
  %s13 = ssub.s32 1, %s11
  %s14 = scalar_select 0, %s13, %s11
  $region1: #{tpu_custom_call.1} parent=0
    #allocation3 [shape = 'u8[8192]{0}', space=vmem, size = 0x2000, scoped, tag = 'input window, operand 0, single buffered']
    #allocation4 [shape = 's32[1]{0}', space=sflag, size = 0x4, scoped, tag = 'scoped memory for tpu_custom_call.1']
    #allocation5 [shape = 's32[1]{0}', space=sflag, size = 0x4, scoped, tag = 'scoped memory for tpu_custom_call.1']
    #allocation6 [shape = 'u8[32768]{0}', space=vmem, size = 0x8000, scoped, tag = 'input window, operand 1, single buffered']
    #allocation7 [shape = 's32[1]{0}', space=sflag, size = 0x4, scoped, tag = 'scoped memory for tpu_custom_call.1']
    #allocation8 [shape = 'u8[8192]{0}', space=vmem, size = 0x2000, scoped, tag = 'input window, operand 3, single buffered']
    #allocation9 [shape = 'u8[8192]{0}', space=vmem, size = 0x2000, scoped, tag = 'input window, operand 4, single buffered']
    #allocation10 [shape = 's32[1]{0}', space=sflag, size = 0x4, scoped, tag = 'scoped memory for tpu_custom_call.1']
    #allocation11 [shape = 'u8[8192]{0}', space=vmem, size = 0x2000, scoped, tag = 'output window, operand 0, single buffered']
    #allocation12 [shape = 'u8[8192]{0}', space=vmem, size = 0x2000, scoped, tag = 'output window, operand 1, single buffered']
    #allocation13 [shape = 's32[1]{0}', space=sflag, size = 0x4, scoped, tag = 'scoped memory for tpu_custom_call.1']
    %15 = vsyncpa [#allocation4], 0
    %16 = vsyncpa [#allocation7], 0
    %17 = vsyncpa [#allocation10], 0
    %18 = vsyncpa [#allocation5], 0
    %19 = vsyncpa [#allocation13], 0
    // Predicated region
    $region2: #{tpu_custom_call.1} parent=1 // pred_check
      _
    $region3: #{tpu_custom_call.1} parent=1 // pred_check_branch
      %21 = sbr.rel (0) target = $region5
    $region4: #{tpu_custom_call.1} parent=1 // pred_region
      %s23 = ssub.s32 256, 256
      %24 = vsyncadd [#allocation4], %s23
      %s25 = sshll.u32 [#allocation3], 4
      %s26 = int_to_ptr.vmem [resolvable:$true] %s25
      %31 = dma.hbm_to_vmem [thread:$0]  %s0, 256, %s26, [#allocation4], 128, 128, 8
    $region5: #{tpu_custom_call.1} parent=1 // pred_fallthru
      _
    // Predicated region
    $region6: #{tpu_custom_call.1} parent=1 // pred_check
      _
    $region7: #{tpu_custom_call.1} parent=1 // pred_check_branch
      %33 = sbr.rel (0) target = $region9
    $region8: #{tpu_custom_call.1} parent=1 // pred_region
      %s35 = ssub.s32 1024, 1024
      %36 = vsyncadd [#allocation7], %s35
      %s37 = sshll.u32 [#allocation6], 4
      %s38 = int_to_ptr.vmem [resolvable:$true] %s37
      %43 = dma.hbm_to_vmem [thread:$0]  %s1, 1024, %s38, [#allocation7], 256, 256, 16
    $region9: #{tpu_custom_call.1} parent=1 // pred_fallthru
      _
    // Predicated region
    $region10: #{tpu_custom_call.1} parent=1 // pred_check
      _
    $region11: #{tpu_custom_call.1} parent=1 // pred_check_branch
      %45 = sbr.rel (0) target = $region13
    $region12: #{tpu_custom_call.1} parent=1 // pred_region
      _
    $region13: #{tpu_custom_call.1} parent=1 // pred_fallthru
      _
    // Predicated region
    $region14: #{tpu_custom_call.1} parent=1 // pred_check
      _
    $region15: #{tpu_custom_call.1} parent=1 // pred_check_branch
      %47 = sbr.rel (0) target = $region17
    $region16: #{tpu_custom_call.1} parent=1 // pred_region
      %s49 = ssub.s32 256, 256
      %50 = vsyncadd [#allocation7], %s49
      %s51 = sshll.u32 [#allocation8], 4
      %s52 = int_to_ptr.vmem [resolvable:$true] %s51
      %57 = dma.hbm_to_vmem [thread:$0]  %s3, 256, %s52, [#allocation7], 128, 128, 8
    $region17: #{tpu_custom_call.1} parent=1 // pred_fallthru
      _
    // Predicated region
    $region18: #{tpu_custom_call.1} parent=1 // pred_check
      _
    $region19: #{tpu_custom_call.1} parent=1 // pred_check_branch
      %59 = sbr.rel (0) target = $region21
    $region20: #{tpu_custom_call.1} parent=1 // pred_region
      %s61 = ssub.s32 256, 256
      %62 = vsyncadd [#allocation10], %s61
      %s63 = sshll.u32 [#allocation9], 4
      %s64 = int_to_ptr.vmem [resolvable:$true] %s63
      %69 = dma.hbm_to_vmem [thread:$0]  %s4, 256, %s64, [#allocation10], 128, 128, 8
    $region21: #{tpu_custom_call.1} parent=1 // pred_fallthru
      _
    // Predicated region
    $region22: #{tpu_custom_call.1} parent=1 // pred_check
      _
    $region23: #{tpu_custom_call.1} parent=1 // pred_check_branch
      %71 = sbr.rel (0) target = $region25
    $region24: #{tpu_custom_call.1} parent=1 // pred_region
      _
    $region25: #{tpu_custom_call.1} parent=1 // pred_fallthru
      _
    // Predicated region
    $region26: #{tpu_custom_call.1} parent=1 // pred_check
      _
    $region27: #{tpu_custom_call.1} parent=1 // pred_check_branch
      %73 = sbr.rel (0) target = $region29
    $region28: #{tpu_custom_call.1} parent=1 // pred_region
      _
    $region29: #{tpu_custom_call.1} parent=1 // pred_fallthru
      _
    // Predicated region
    $region30: #{tpu_custom_call.1} parent=1 // pred_check
      _
    $region31: #{tpu_custom_call.1} parent=1 // pred_check_branch
      %75 = sbr.rel (0) target = $region33
    $region32: #{tpu_custom_call.1} parent=1 // pred_region
      _
    $region33: #{tpu_custom_call.1} parent=1 // pred_fallthru
      _
    // Predicated region
    $region34: #{tpu_custom_call.1} parent=1 // pred_check
      _
    $region35: #{tpu_custom_call.1} parent=1 // pred_check_branch
      %77 = sbr.rel (0) target = $region37
    $region36: #{tpu_custom_call.1} parent=1 // pred_region
      %78 = dma.done [#allocation4], 256
    $region37: #{tpu_custom_call.1} parent=1 // pred_fallthru
      _
    // Predicated region
    $region38: #{tpu_custom_call.1} parent=1 // pred_check
      _
    $region39: #{tpu_custom_call.1} parent=1 // pred_check_branch
      %80 = sbr.rel (0) target = $region41
    $region40: #{tpu_custom_call.1} parent=1 // pred_region
      %81 = dma.done [#allocation7], 1024
    $region41: #{tpu_custom_call.1} parent=1 // pred_fallthru
      _
    // Predicated region
    $region42: #{tpu_custom_call.1} parent=1 // pred_check
      _
    $region43: #{tpu_custom_call.1} parent=1 // pred_check_branch
      %83 = sbr.rel (0) target = $region45
    $region44: #{tpu_custom_call.1} parent=1 // pred_region
      %84 = dma.done [#allocation7], 256
    $region45: #{tpu_custom_call.1} parent=1 // pred_fallthru
      _
    // Predicated region
    $region46: #{tpu_custom_call.1} parent=1 // pred_check
      _
    $region47: #{tpu_custom_call.1} parent=1 // pred_check_branch
      %86 = sbr.rel (0) target = $region49
    $region48: #{tpu_custom_call.1} parent=1 // pred_region
      %87 = dma.done [#allocation10], 256
    $region49: #{tpu_custom_call.1} parent=1 // pred_fallthru
      _
    %v88 = vld [vmem:[#allocation3] sm:$0xff]
    %v89 = vld [vmem:[#allocation3 + $0x8] sm:$0xff]
    %v90 = vld [vmem:[#allocation6] sm:$0xff]
    %v91 = vld [vmem:[#allocation6 + $0x8] sm:$0xff]
    %v92 = vld [vmem:[#allocation6 + $0x10] sm:$0xff]
    %v93 = vld [vmem:[#allocation6 + $0x18] sm:$0xff]
    %v94 = vld [vmem:[#allocation6 + $0x20] sm:$0xff]
    %v95 = vld [vmem:[#allocation6 + $0x28] sm:$0xff]
    %v96 = vld [vmem:[#allocation6 + $0x30] sm:$0xff]
    %v97 = vld [vmem:[#allocation6 + $0x38] sm:$0xff]
    %v98 = vld [vmem:[%s2] sm:$0x3]
    %v100 = vlaneseq
    %v101 = vshrl.u32 %v100, 7
    %v102 = vsub.s32 0, %v101
    %v103 = vrot.slane %v98, %v102
    %v104 = vlaneseq
    %v105 = vshrl.u32 %v104, 7
    %v106 = vsub.s32 1, %v105
    %v107 = vrot.slane %v98, %v106
    %vm110 = vcmask 261120
    %v112 = vsel %vm110, %v88, 0
    %v115 = vsel %vm110, %v89, 0
    %117 = vmatprep.subr.mxu0 %v91
    %118 = vmatpush1.msra.mxu0 %v90
    %119 = vmatprep.subr.mxu0 %v93
    %120 = vmatpush1.msra.mxu0 %v92
    %121 = vmatprep.subr.mxu0 %v95
    %122 = vmatpush1.msra.mxu0 %v94
    %123 = vmatprep.subr.mxu0 %v97
    %124 = vmatpush1.msra.mxu0 %v96
    %125 = vmatprep.subr.mxu0 0.0
    %126 = vmatpush1.msra.mxu0 0.0
    %127 = vmatprep.subr.mxu0 0.0
    %128 = vmatpush1.msra.mxu0 0.0
    %129 = vmatprep.subr.mxu0 0.0
    %130 = vmatpush1.msra.mxu0 0.0
    %131 = vmatprep.subr.mxu0 0.0
    %132 = vmatpush1.msra.mxu0 0.0
    %133 = vmatprep.subr.mxu0 0.0
    %134 = vmatpush1.msra.mxu0 0.0
    %135 = vmatprep.subr.mxu0 0.0
    %136 = vmatpush1.msra.mxu0 0.0
    %137 = vmatprep.subr.mxu0 0.0
    %138 = vmatpush1.msra.mxu0 0.0
    %139 = vmatprep.subr.mxu0 0.0
    %140 = vmatpush1.msra.mxu0 0.0
    %141 = vmatprep.subr.mxu0 0.0
    %142 = vmatpush1.msra.mxu0 0.0
    %143 = vmatprep.subr.mxu0 0.0
    %144 = vmatpush1.msra.mxu0 0.0
    %145 = vmatprep.subr.mxu0 0.0
    %146 = vmatpush1.msra.mxu0 0.0
    %147 = vmatprep.subr.mxu0 0.0
    %148 = vmatpush1.msra.mxu0 0.0
    %149 = vmatprep.subr.mxu0 0.0
    %150 = vmatpush1.msra.mxu0 0.0
    %151 = vmatprep.subr.mxu0 0.0
    %152 = vmatpush1.msra.mxu0 0.0
    %153 = vmatprep.subr.mxu0 0.0
    %154 = vmatpush1.msra.mxu0 0.0
    %155 = vmatprep.subr.mxu0 0.0
    %156 = vmatpush1.msra.mxu0 0.0
    %157 = vmatprep.subr.mxu0 0.0
    %158 = vmatpush1.msra.mxu0 0.0
    %159 = vmatprep.subr.mxu0 0.0
    %160 = vmatpush1.msra.mxu0 0.0
    %161 = vmatprep.subr.mxu0 0.0
    %162 = vmatpush1.msra.mxu0 0.0
    %163 = vmatprep.subr.mxu0 0.0
    %164 = vmatpush1.msra.mxu0 0.0
    %165 = vmatprep.subr.mxu0 0.0
    %166 = vmatpush1.msra.mxu0 0.0
    %167 = vmatprep.subr.mxu0 0.0
    %168 = vmatpush1.msra.mxu0 0.0
    %169 = vmatprep.subr.mxu0 0.0
    %170 = vmatpush1.msra.mxu0 0.0
    %171 = vmatprep.subr.mxu0 0.0
    %172 = vmatpush1.msra.mxu0 0.0
    %173 = vmatprep.subr.mxu0 0.0
    %174 = vmatpush1.msra.mxu0 0.0
    %175 = vmatprep.subr.mxu0 0.0
    %176 = vmatpush1.msra.mxu0 0.0
    %177 = vmatprep.subr.mxu0 0.0
    %178 = vmatpush1.msra.mxu0 0.0
    %179 = vmatprep.subr.mxu0 0.0
    %180 = vmatpush1.msra.mxu0 0.0
    %181 = vmatprep.mubr.f32.mxu0 0.0
    %182 = vmatmul.mubr.f32.gmra.mrb[0].mxu0 %v112
    %v183 = vpop.f32.mrb[0].mxu0
    %v184 = vadd.f32 %v103, %v183
    %v185 = vpop.f32.mrb[0].mxu0
    %v186 = vadd.f32 %v107, %v185
    %187 = vmatprep.mubr.f32.mxu0 0.0
    %188 = vmatmul.mubr.f32.gmra.mrb[0].mxu0 %v115
    %v189 = vpop.f32.mrb[0].mxu0
    %v190 = vadd.f32 %v103, %v189
    %v191 = vpop.f32.mrb[0].mxu0
    %v192 = vadd.f32 %v107, %v191
    %193 = vdwg.mxu0
    %v194 = vld [vmem:[#allocation8] sm:$0xff]
    %v195 = vld [vmem:[#allocation8 + $0x8] sm:$0xff]
    %v196 = vld [vmem:[#allocation9] sm:$0xff]
    %v197 = vld [vmem:[#allocation9 + $0x8] sm:$0xff]
    %v198 = vmul.f32 %v184, %v194
    %v199 = vmul.f32 %v190, %v195
    %202 = vrot.lane.b32.xlu0 %v196, 96
    %v203 = vpop.permute.xlu0 %202
    %204 = vrot.lane.b32.xlu0 %v197, 96
    %v205 = vpop.permute.xlu0 %204
    %v208 = vmul.f32 %v184, %v203
    %v209 = vmul.f32 %v190, %v205
    %212 = vrot.lane.b32.xlu0 %v208, 32
    %v213 = vpop.permute.xlu0 %212
    %214 = vrot.lane.b32.xlu0 %v209, 32
    %v215 = vpop.permute.xlu0 %214
    %v218 = vadd.f32 %v198, %v213
    %v219 = vadd.f32 %v199, %v215
    %222 = vrot.lane.b32.xlu0 %v194, 32
    %v223 = vpop.permute.xlu0 %222
    %224 = vrot.lane.b32.xlu0 %v195, 32
    %v225 = vpop.permute.xlu0 %224
    %v228 = vmul.f32 %v184, %v223
    %v229 = vmul.f32 %v190, %v225
    %v230 = vmul.f32 %v186, %v196
    %v231 = vmul.f32 %v192, %v197
    %234 = vrot.lane.b32.xlu0 %v230, 32
    %v235 = vpop.permute.xlu0 %234
    %236 = vrot.lane.b32.xlu0 %v231, 32
    %v237 = vpop.permute.xlu0 %236
    %v240 = vadd.f32 %v228, %v235
    %v241 = vadd.f32 %v229, %v237
    %v242 = vld [vmem:[%s5] sm:$0xff]
    %244 = vrot.lane.b32.xlu0 %v240, 96
    %v245 = vpop.permute.xlu0 %244
    %vm246 = vcmask 64512
    %v248 = vsel %vm246, %v218, 0
    %v250 = vsel %vm246, %v245, 0
    %252 = vmatprep.subr.mxu0 0.0
    %253 = vmatpush1.xpose.msra.mxu0 %v250
    %254 = vmatprep.subr.mxu0 0.0
    %255 = vmatpush1.xpose.msra.mxu0 0.0
    %256 = vmatprep.subr.mxu0 0.0
    %257 = vmatpush1.xpose.msra.mxu0 0.0
    %258 = vmatprep.subr.mxu0 0.0
    %259 = vmatpush1.xpose.msra.mxu0 0.0
    %260 = vmatprep.subr.mxu0 0.0
    %261 = vmatpush1.xpose.msra.mxu0 0.0
    %262 = vmatprep.subr.mxu0 0.0
    %263 = vmatpush1.xpose.msra.mxu0 0.0
    %264 = vmatprep.subr.mxu0 0.0
    %265 = vmatpush1.xpose.msra.mxu0 0.0
    %266 = vmatprep.subr.mxu0 0.0
    %267 = vmatpush1.xpose.msra.mxu0 0.0
    %268 = vmatprep.subr.mxu0 0.0
    %269 = vmatpush1.xpose.msra.mxu0 0.0
    %270 = vmatprep.subr.mxu0 0.0
    %271 = vmatpush1.xpose.msra.mxu0 0.0
    %272 = vmatprep.subr.mxu0 0.0
    %273 = vmatpush1.xpose.msra.mxu0 0.0
    %274 = vmatprep.subr.mxu0 0.0
    %275 = vmatpush1.xpose.msra.mxu0 0.0
    %276 = vmatprep.subr.mxu0 0.0
    %277 = vmatpush1.xpose.msra.mxu0 0.0
    %278 = vmatprep.subr.mxu0 0.0
    %279 = vmatpush1.xpose.msra.mxu0 0.0
    %280 = vmatprep.subr.mxu0 0.0
    %281 = vmatpush1.xpose.msra.mxu0 0.0
    %282 = vmatprep.subr.mxu0 0.0
    %283 = vmatpush1.xpose.msra.mxu0 0.0
    %284 = vmatprep.subr.mxu0 0.0
    %285 = vmatpush1.xpose.msra.mxu0 0.0
    %286 = vmatprep.subr.mxu0 0.0
    %287 = vmatpush1.xpose.msra.mxu0 0.0
    %288 = vmatprep.subr.mxu0 0.0
    %289 = vmatpush1.xpose.msra.mxu0 0.0
    %290 = vmatprep.subr.mxu0 0.0
    %291 = vmatpush1.xpose.msra.mxu0 0.0
    %292 = vmatprep.subr.mxu0 0.0
    %293 = vmatpush1.xpose.msra.mxu0 0.0
    %294 = vmatprep.subr.mxu0 0.0
    %295 = vmatpush1.xpose.msra.mxu0 0.0
    %296 = vmatprep.subr.mxu0 0.0
    %297 = vmatpush1.xpose.msra.mxu0 0.0
    %298 = vmatprep.subr.mxu0 0.0
    %299 = vmatpush1.xpose.msra.mxu0 0.0
    %300 = vmatprep.subr.mxu0 0.0
    %301 = vmatpush1.xpose.msra.mxu0 0.0
    %302 = vmatprep.subr.mxu0 0.0
    %303 = vmatpush1.xpose.msra.mxu0 0.0
    %304 = vmatprep.subr.mxu0 0.0
    %305 = vmatpush1.xpose.msra.mxu0 0.0
    %306 = vmatprep.subr.mxu0 0.0
    %307 = vmatpush1.xpose.msra.mxu0 0.0
    %308 = vmatprep.subr.mxu0 0.0
    %309 = vmatpush1.xpose.msra.mxu0 0.0
    %310 = vmatprep.subr.mxu0 0.0
    %311 = vmatpush1.xpose.msra.mxu0 0.0
    %312 = vmatprep.subr.mxu0 0.0
    %313 = vmatpush1.xpose.msra.mxu0 0.0
    %314 = vmatprep.subr.mxu0 0.0
    %315 = vmatpush1.xpose.msra.mxu0 0.0
    %316 = vmatprep.mubr.f32.mxu0 0.0
    %317 = vmatmul.mubr.f32.gmra.mrb[0].mxu0 %v248
    %v318 = vpop.f32.mrb[0].mxu0
    %v319 = vadd.f32 %v242, %v318
    %v320 = vpop.f32.mrb[0].mxu0
    %321 = vdwg.mxu0
    %v322 = vsel %vm246, %v319, -inf
    %323 = vmax.xlane.f32.xlu0 %v322
    %v324 = vpop.xlane.xlu0 %323
    %v325 = vsub.f32 %v319, %v324
    %v326 = vmul.f32 %v325, 1.442695
    %v327 = vpow.pop %v326
    %v328 = vsel %vm246, %v327, 0.0
    %329 = vadd.xlane.f32.xlu0 %v328
    %v330 = vpop.xlane.xlu0 %329
    %v331 = vrcp.pop %v330
    %v332 = vmul.f32 %v327, %v331
    %333 = vst.msk [vmem:[#allocation12] sm:$0xff] %vm246, %v332
    %335 = vrot.lane.b32.xlu0 %v184, 64
    %v336 = vpop.permute.xlu0 %335
    %v339 = vsel %vm246, %v332, 0
    %341 = vmatprep.subr.mxu0 0.0
    %342 = vmatpush1.msra.mxu0 %v336
    %343 = vmatprep.subr.mxu0 0.0
    %344 = vmatpush1.msra.mxu0 0.0
    %345 = vmatprep.subr.mxu0 0.0
    %346 = vmatpush1.msra.mxu0 0.0
    %347 = vmatprep.subr.mxu0 0.0
    %348 = vmatpush1.msra.mxu0 0.0
    %349 = vmatprep.subr.mxu0 0.0
    %350 = vmatpush1.msra.mxu0 0.0
    %351 = vmatprep.subr.mxu0 0.0
    %352 = vmatpush1.msra.mxu0 0.0
    %353 = vmatprep.subr.mxu0 0.0
    %354 = vmatpush1.msra.mxu0 0.0
    %355 = vmatprep.subr.mxu0 0.0
    %356 = vmatpush1.msra.mxu0 0.0
    %357 = vmatprep.subr.mxu0 0.0
    %358 = vmatpush1.msra.mxu0 0.0
    %359 = vmatprep.subr.mxu0 0.0
    %360 = vmatpush1.msra.mxu0 0.0
    %361 = vmatprep.subr.mxu0 0.0
    %362 = vmatpush1.msra.mxu0 0.0
    %363 = vmatprep.subr.mxu0 0.0
    %364 = vmatpush1.msra.mxu0 0.0
    %365 = vmatprep.subr.mxu0 0.0
    %366 = vmatpush1.msra.mxu0 0.0
    %367 = vmatprep.subr.mxu0 0.0
    %368 = vmatpush1.msra.mxu0 0.0
    %369 = vmatprep.subr.mxu0 0.0
    %370 = vmatpush1.msra.mxu0 0.0
    %371 = vmatprep.subr.mxu0 0.0
    %372 = vmatpush1.msra.mxu0 0.0
    %373 = vmatprep.subr.mxu0 0.0
    %374 = vmatpush1.msra.mxu0 0.0
    %375 = vmatprep.subr.mxu0 0.0
    %376 = vmatpush1.msra.mxu0 0.0
    %377 = vmatprep.subr.mxu0 0.0
    %378 = vmatpush1.msra.mxu0 0.0
    %379 = vmatprep.subr.mxu0 0.0
    %380 = vmatpush1.msra.mxu0 0.0
    %381 = vmatprep.subr.mxu0 0.0
    %382 = vmatpush1.msra.mxu0 0.0
    %383 = vmatprep.subr.mxu0 0.0
    %384 = vmatpush1.msra.mxu0 0.0
    %385 = vmatprep.subr.mxu0 0.0
    %386 = vmatpush1.msra.mxu0 0.0
    %387 = vmatprep.subr.mxu0 0.0
    %388 = vmatpush1.msra.mxu0 0.0
    %389 = vmatprep.subr.mxu0 0.0
    %390 = vmatpush1.msra.mxu0 0.0
    %391 = vmatprep.subr.mxu0 0.0
    %392 = vmatpush1.msra.mxu0 0.0
    %393 = vmatprep.subr.mxu0 0.0
    %394 = vmatpush1.msra.mxu0 0.0
    %395 = vmatprep.subr.mxu0 0.0
    %396 = vmatpush1.msra.mxu0 0.0
    %397 = vmatprep.subr.mxu0 0.0
    %398 = vmatpush1.msra.mxu0 0.0
    %399 = vmatprep.subr.mxu0 0.0
    %400 = vmatpush1.msra.mxu0 0.0
    %401 = vmatprep.subr.mxu0 0.0
    %402 = vmatpush1.msra.mxu0 0.0
    %403 = vmatprep.subr.mxu0 0.0
    %404 = vmatpush1.msra.mxu0 0.0
    %405 = vmatprep.mubr.f32.mxu0 0.0
    %406 = vmatmul.mubr.f32.gmra.mrb[0].mxu0 %v339
    %v407 = vpop.f32.mrb[0].mxu0
    %v408 = vadd.f32 0.0, %v407
    %v409 = vpop.f32.mrb[0].mxu0
    %410 = vdwg.mxu0
    %411 = vst.msk [vmem:[#allocation2] sm:$0xff] %vm246, %v408
    %412 = vrot.lane.b32.xlu0 %v218, 120
    %v413 = vpop.permute.xlu0 %412
    %414 = vrot.lane.b32.xlu0 %v240, 88
    %v415 = vpop.permute.xlu0 %414
    %v416 = vsel %vm246, %v413, 0
    %v418 = vsel %vm246, %v415, 0
    %420 = vmatprep.subr.mxu0 0.0
    %421 = vmatpush1.xpose.msra.mxu0 %v418
    %422 = vmatprep.subr.mxu0 0.0
    %423 = vmatpush1.xpose.msra.mxu0 0.0
    %424 = vmatprep.subr.mxu0 0.0
    %425 = vmatpush1.xpose.msra.mxu0 0.0
    %426 = vmatprep.subr.mxu0 0.0
    %427 = vmatpush1.xpose.msra.mxu0 0.0
    %428 = vmatprep.subr.mxu0 0.0
    %429 = vmatpush1.xpose.msra.mxu0 0.0
    %430 = vmatprep.subr.mxu0 0.0
    %431 = vmatpush1.xpose.msra.mxu0 0.0
    %432 = vmatprep.subr.mxu0 0.0
    %433 = vmatpush1.xpose.msra.mxu0 0.0
    %434 = vmatprep.subr.mxu0 0.0
    %435 = vmatpush1.xpose.msra.mxu0 0.0
    %436 = vmatprep.subr.mxu0 0.0
    %437 = vmatpush1.xpose.msra.mxu0 0.0
    %438 = vmatprep.subr.mxu0 0.0
    %439 = vmatpush1.xpose.msra.mxu0 0.0
    %440 = vmatprep.subr.mxu0 0.0
    %441 = vmatpush1.xpose.msra.mxu0 0.0
    %442 = vmatprep.subr.mxu0 0.0
    %443 = vmatpush1.xpose.msra.mxu0 0.0
    %444 = vmatprep.subr.mxu0 0.0
    %445 = vmatpush1.xpose.msra.mxu0 0.0
    %446 = vmatprep.subr.mxu0 0.0
    %447 = vmatpush1.xpose.msra.mxu0 0.0
    %448 = vmatprep.subr.mxu0 0.0
    %449 = vmatpush1.xpose.msra.mxu0 0.0
    %450 = vmatprep.subr.mxu0 0.0
    %451 = vmatpush1.xpose.msra.mxu0 0.0
    %452 = vmatprep.subr.mxu0 0.0
    %453 = vmatpush1.xpose.msra.mxu0 0.0
    %454 = vmatprep.subr.mxu0 0.0
    %455 = vmatpush1.xpose.msra.mxu0 0.0
    %456 = vmatprep.subr.mxu0 0.0
    %457 = vmatpush1.xpose.msra.mxu0 0.0
    %458 = vmatprep.subr.mxu0 0.0
    %459 = vmatpush1.xpose.msra.mxu0 0.0
    %460 = vmatprep.subr.mxu0 0.0
    %461 = vmatpush1.xpose.msra.mxu0 0.0
    %462 = vmatprep.subr.mxu0 0.0
    %463 = vmatpush1.xpose.msra.mxu0 0.0
    %464 = vmatprep.subr.mxu0 0.0
    %465 = vmatpush1.xpose.msra.mxu0 0.0
    %466 = vmatprep.subr.mxu0 0.0
    %467 = vmatpush1.xpose.msra.mxu0 0.0
    %468 = vmatprep.subr.mxu0 0.0
    %469 = vmatpush1.xpose.msra.mxu0 0.0
    %470 = vmatprep.subr.mxu0 0.0
    %471 = vmatpush1.xpose.msra.mxu0 0.0
    %472 = vmatprep.subr.mxu0 0.0
    %473 = vmatpush1.xpose.msra.mxu0 0.0
    %474 = vmatprep.subr.mxu0 0.0
    %475 = vmatpush1.xpose.msra.mxu0 0.0
    %476 = vmatprep.subr.mxu0 0.0
    %477 = vmatpush1.xpose.msra.mxu0 0.0
    %478 = vmatprep.subr.mxu0 0.0
    %479 = vmatpush1.xpose.msra.mxu0 0.0
    %480 = vmatprep.subr.mxu0 0.0
    %481 = vmatpush1.xpose.msra.mxu0 0.0
    %482 = vmatprep.subr.mxu0 0.0
    %483 = vmatpush1.xpose.msra.mxu0 0.0
    %484 = vmatprep.mubr.f32.mxu0 0.0
    %485 = vmatmul.mubr.f32.gmra.mrb[0].mxu0 %v416
    %v486 = vpop.f32.mrb[0].mxu0
    %v487 = vadd.f32 %v242, %v486
    %v488 = vpop.f32.mrb[0].mxu0
    %489 = vdwg.mxu0
    %v490 = vsel %vm246, %v487, -inf
    %491 = vmax.xlane.f32.xlu0 %v490
    %v492 = vpop.xlane.xlu0 %491
    %v493 = vsub.f32 %v487, %v492
    %v494 = vmul.f32 %v493, 1.442695
    %v495 = vpow.pop %v494
    %v496 = vsel %vm246, %v495, 0.0
    %497 = vadd.xlane.f32.xlu0 %v496
    %v498 = vpop.xlane.xlu0 %497
    %v499 = vrcp.pop %v498
    %v500 = vmul.f32 %v495, %v499
    %502 = vrot.lane.b32.xlu0 %v500, 8
    %v503 = vpop.permute.xlu0 %502
    %vm505 = vcmask 130112
    %506 = vst.msk [vmem:[#allocation12] sm:$0xff] %vm505, %v503
    %507 = vrot.lane.b32.xlu0 %v184, 56
    %v508 = vpop.permute.xlu0 %507
    %v510 = vsel %vm246, %v500, 0
    %512 = vmatprep.subr.mxu0 0.0
    %513 = vmatpush1.msra.mxu0 %v508
    %514 = vmatprep.subr.mxu0 0.0
    %515 = vmatpush1.msra.mxu0 0.0
    %516 = vmatprep.subr.mxu0 0.0
    %517 = vmatpush1.msra.mxu0 0.0
    %518 = vmatprep.subr.mxu0 0.0
    %519 = vmatpush1.msra.mxu0 0.0
    %520 = vmatprep.subr.mxu0 0.0
    %521 = vmatpush1.msra.mxu0 0.0
    %522 = vmatprep.subr.mxu0 0.0
    %523 = vmatpush1.msra.mxu0 0.0
    %524 = vmatprep.subr.mxu0 0.0
    %525 = vmatpush1.msra.mxu0 0.0
    %526 = vmatprep.subr.mxu0 0.0
    %527 = vmatpush1.msra.mxu0 0.0
    %528 = vmatprep.subr.mxu0 0.0
    %529 = vmatpush1.msra.mxu0 0.0
    %530 = vmatprep.subr.mxu0 0.0
    %531 = vmatpush1.msra.mxu0 0.0
    %532 = vmatprep.subr.mxu0 0.0
    %533 = vmatpush1.msra.mxu0 0.0
    %534 = vmatprep.subr.mxu0 0.0
    %535 = vmatpush1.msra.mxu0 0.0
    %536 = vmatprep.subr.mxu0 0.0
    %537 = vmatpush1.msra.mxu0 0.0
    %538 = vmatprep.subr.mxu0 0.0
    %539 = vmatpush1.msra.mxu0 0.0
    %540 = vmatprep.subr.mxu0 0.0
    %541 = vmatpush1.msra.mxu0 0.0
    %542 = vmatprep.subr.mxu0 0.0
    %543 = vmatpush1.msra.mxu0 0.0
    %544 = vmatprep.subr.mxu0 0.0
    %545 = vmatpush1.msra.mxu0 0.0
    %546 = vmatprep.subr.mxu0 0.0
    %547 = vmatpush1.msra.mxu0 0.0
    %548 = vmatprep.subr.mxu0 0.0
    %549 = vmatpush1.msra.mxu0 0.0
    %550 = vmatprep.subr.mxu0 0.0
    %551 = vmatpush1.msra.mxu0 0.0
    %552 = vmatprep.subr.mxu0 0.0
    %553 = vmatpush1.msra.mxu0 0.0
    %554 = vmatprep.subr.mxu0 0.0
    %555 = vmatpush1.msra.mxu0 0.0
    %556 = vmatprep.subr.mxu0 0.0
    %557 = vmatpush1.msra.mxu0 0.0
    %558 = vmatprep.subr.mxu0 0.0
    %559 = vmatpush1.msra.mxu0 0.0
    %560 = vmatprep.subr.mxu0 0.0
    %561 = vmatpush1.msra.mxu0 0.0
    %562 = vmatprep.subr.mxu0 0.0
    %563 = vmatpush1.msra.mxu0 0.0
    %564 = vmatprep.subr.mxu0 0.0
    %565 = vmatpush1.msra.mxu0 0.0
    %566 = vmatprep.subr.mxu0 0.0
    %567 = vmatpush1.msra.mxu0 0.0
    %568 = vmatprep.subr.mxu0 0.0
    %569 = vmatpush1.msra.mxu0 0.0
    %570 = vmatprep.subr.mxu0 0.0
    %571 = vmatpush1.msra.mxu0 0.0
    %572 = vmatprep.subr.mxu0 0.0
    %573 = vmatpush1.msra.mxu0 0.0
    %574 = vmatprep.subr.mxu0 0.0
    %575 = vmatpush1.msra.mxu0 0.0
    %576 = vmatprep.mubr.f32.mxu0 0.0
    %577 = vmatmul.mubr.f32.gmra.mrb[0].mxu0 %v510
    %v578 = vpop.f32.mrb[0].mxu0
    %v579 = vadd.f32 0.0, %v578
    %v580 = vpop.f32.mrb[0].mxu0
    %581 = vdwg.mxu0
    %583 = vrot.lane.b32.xlu0 %v579, 8
    %v584 = vpop.permute.xlu0 %583
    %586 = vst.msk [vmem:[#allocation2] sm:$0xff] %vm505, %v584
    %587 = vrot.lane.b32.xlu0 %v218, 112
    %v588 = vpop.permute.xlu0 %587
    %589 = vrot.lane.b32.xlu0 %v240, 80
    %v590 = vpop.permute.xlu0 %589
    %v591 = vsel %vm246, %v588, 0
    %v593 = vsel %vm246, %v590, 0
    %595 = vmatprep.subr.mxu0 0.0
    %596 = vmatpush1.xpose.msra.mxu0 %v593
    %597 = vmatprep.subr.mxu0 0.0
    %598 = vmatpush1.xpose.msra.mxu0 0.0
    %599 = vmatprep.subr.mxu0 0.0
    %600 = vmatpush1.xpose.msra.mxu0 0.0
    %601 = vmatprep.subr.mxu0 0.0
    %602 = vmatpush1.xpose.msra.mxu0 0.0
    %603 = vmatprep.subr.mxu0 0.0
    %604 = vmatpush1.xpose.msra.mxu0 0.0
    %605 = vmatprep.subr.mxu0 0.0
    %606 = vmatpush1.xpose.msra.mxu0 0.0
    %607 = vmatprep.subr.mxu0 0.0
    %608 = vmatpush1.xpose.msra.mxu0 0.0
    %609 = vmatprep.subr.mxu0 0.0
    %610 = vmatpush1.xpose.msra.mxu0 0.0
    %611 = vmatprep.subr.mxu0 0.0
    %612 = vmatpush1.xpose.msra.mxu0 0.0
    %613 = vmatprep.subr.mxu0 0.0
    %614 = vmatpush1.xpose.msra.mxu0 0.0
    %615 = vmatprep.subr.mxu0 0.0
    %616 = vmatpush1.xpose.msra.mxu0 0.0
    %617 = vmatprep.subr.mxu0 0.0
    %618 = vmatpush1.xpose.msra.mxu0 0.0
    %619 = vmatprep.subr.mxu0 0.0
    %620 = vmatpush1.xpose.msra.mxu0 0.0
    %621 = vmatprep.subr.mxu0 0.0
    %622 = vmatpush1.xpose.msra.mxu0 0.0
    %623 = vmatprep.subr.mxu0 0.0
    %624 = vmatpush1.xpose.msra.mxu0 0.0
    %625 = vmatprep.subr.mxu0 0.0
    %626 = vmatpush1.xpose.msra.mxu0 0.0
    %627 = vmatprep.subr.mxu0 0.0
    %628 = vmatpush1.xpose.msra.mxu0 0.0
    %629 = vmatprep.subr.mxu0 0.0
    %630 = vmatpush1.xpose.msra.mxu0 0.0
    %631 = vmatprep.subr.mxu0 0.0
    %632 = vmatpush1.xpose.msra.mxu0 0.0
    %633 = vmatprep.subr.mxu0 0.0
    %634 = vmatpush1.xpose.msra.mxu0 0.0
    %635 = vmatprep.subr.mxu0 0.0
    %636 = vmatpush1.xpose.msra.mxu0 0.0
    %637 = vmatprep.subr.mxu0 0.0
    %638 = vmatpush1.xpose.msra.mxu0 0.0
    %639 = vmatprep.subr.mxu0 0.0
    %640 = vmatpush1.xpose.msra.mxu0 0.0
    %641 = vmatprep.subr.mxu0 0.0
    %642 = vmatpush1.xpose.msra.mxu0 0.0
    %643 = vmatprep.subr.mxu0 0.0
    %644 = vmatpush1.xpose.msra.mxu0 0.0
    %645 = vmatprep.subr.mxu0 0.0
    %646 = vmatpush1.xpose.msra.mxu0 0.0
    %647 = vmatprep.subr.mxu0 0.0
    %648 = vmatpush1.xpose.msra.mxu0 0.0
    %649 = vmatprep.subr.mxu0 0.0
    %650 = vmatpush1.xpose.msra.mxu0 0.0
    %651 = vmatprep.subr.mxu0 0.0
    %652 = vmatpush1.xpose.msra.mxu0 0.0
    %653 = vmatprep.subr.mxu0 0.0
    %654 = vmatpush1.xpose.msra.mxu0 0.0
    %655 = vmatprep.subr.mxu0 0.0
    %656 = vmatpush1.xpose.msra.mxu0 0.0
    %657 = vmatprep.subr.mxu0 0.0
    %658 = vmatpush1.xpose.msra.mxu0 0.0
    %659 = vmatprep.mubr.f32.mxu0 0.0
    %660 = vmatmul.mubr.f32.gmra.mrb[0].mxu0 %v591
    %v661 = vpop.f32.mrb[0].mxu0
    %v662 = vadd.f32 %v242, %v661
    %v663 = vpop.f32.mrb[0].mxu0
    %664 = vdwg.mxu0
    %v665 = vsel %vm246, %v662, -inf
    %666 = vmax.xlane.f32.xlu0 %v665
    %v667 = vpop.xlane.xlu0 %666
    %v668 = vsub.f32 %v662, %v667
    %v669 = vmul.f32 %v668, 1.442695
    %v670 = vpow.pop %v669
    %v671 = vsel %vm246, %v670, 0.0
    %672 = vadd.xlane.f32.xlu0 %v671
    %v673 = vpop.xlane.xlu0 %672
    %v674 = vrcp.pop %v673
    %v675 = vmul.f32 %v670, %v674
    %677 = vrot.lane.b32.xlu0 %v675, 16
    %v678 = vpop.permute.xlu0 %677
    %vm680 = vcmask 195712
    %681 = vst.msk [vmem:[#allocation12] sm:$0xff] %vm680, %v678
    %682 = vrot.lane.b32.xlu0 %v184, 48
    %v683 = vpop.permute.xlu0 %682
    %v685 = vsel %vm246, %v675, 0
    %687 = vmatprep.subr.mxu0 0.0
    %688 = vmatpush1.msra.mxu0 %v683
    %689 = vmatprep.subr.mxu0 0.0
    %690 = vmatpush1.msra.mxu0 0.0
    %691 = vmatprep.subr.mxu0 0.0
    %692 = vmatpush1.msra.mxu0 0.0
    %693 = vmatprep.subr.mxu0 0.0
    %694 = vmatpush1.msra.mxu0 0.0
    %695 = vmatprep.subr.mxu0 0.0
    %696 = vmatpush1.msra.mxu0 0.0
    %697 = vmatprep.subr.mxu0 0.0
    %698 = vmatpush1.msra.mxu0 0.0
    %699 = vmatprep.subr.mxu0 0.0
    %700 = vmatpush1.msra.mxu0 0.0
    %701 = vmatprep.subr.mxu0 0.0
    %702 = vmatpush1.msra.mxu0 0.0
    %703 = vmatprep.subr.mxu0 0.0
    %704 = vmatpush1.msra.mxu0 0.0
    %705 = vmatprep.subr.mxu0 0.0
    %706 = vmatpush1.msra.mxu0 0.0
    %707 = vmatprep.subr.mxu0 0.0
    %708 = vmatpush1.msra.mxu0 0.0
    %709 = vmatprep.subr.mxu0 0.0
    %710 = vmatpush1.msra.mxu0 0.0
    %711 = vmatprep.subr.mxu0 0.0
    %712 = vmatpush1.msra.mxu0 0.0
    %713 = vmatprep.subr.mxu0 0.0
    %714 = vmatpush1.msra.mxu0 0.0
    %715 = vmatprep.subr.mxu0 0.0
    %716 = vmatpush1.msra.mxu0 0.0
    %717 = vmatprep.subr.mxu0 0.0
    %718 = vmatpush1.msra.mxu0 0.0
    %719 = vmatprep.subr.mxu0 0.0
    %720 = vmatpush1.msra.mxu0 0.0
    %721 = vmatprep.subr.mxu0 0.0
    %722 = vmatpush1.msra.mxu0 0.0
    %723 = vmatprep.subr.mxu0 0.0
    %724 = vmatpush1.msra.mxu0 0.0
    %725 = vmatprep.subr.mxu0 0.0
    %726 = vmatpush1.msra.mxu0 0.0
    %727 = vmatprep.subr.mxu0 0.0
    %728 = vmatpush1.msra.mxu0 0.0
    %729 = vmatprep.subr.mxu0 0.0
    %730 = vmatpush1.msra.mxu0 0.0
    %731 = vmatprep.subr.mxu0 0.0
    %732 = vmatpush1.msra.mxu0 0.0
    %733 = vmatprep.subr.mxu0 0.0
    %734 = vmatpush1.msra.mxu0 0.0
    %735 = vmatprep.subr.mxu0 0.0
    %736 = vmatpush1.msra.mxu0 0.0
    %737 = vmatprep.subr.mxu0 0.0
    %738 = vmatpush1.msra.mxu0 0.0
    %739 = vmatprep.subr.mxu0 0.0
    %740 = vmatpush1.msra.mxu0 0.0
    %741 = vmatprep.subr.mxu0 0.0
    %742 = vmatpush1.msra.mxu0 0.0
    %743 = vmatprep.subr.mxu0 0.0
    %744 = vmatpush1.msra.mxu0 0.0
    %745 = vmatprep.subr.mxu0 0.0
    %746 = vmatpush1.msra.mxu0 0.0
    %747 = vmatprep.subr.mxu0 0.0
    %748 = vmatpush1.msra.mxu0 0.0
    %749 = vmatprep.subr.mxu0 0.0
    %750 = vmatpush1.msra.mxu0 0.0
    %751 = vmatprep.mubr.f32.mxu0 0.0
    %752 = vmatmul.mubr.f32.gmra.mrb[0].mxu0 %v685
    %v753 = vpop.f32.mrb[0].mxu0
    %v754 = vadd.f32 0.0, %v753
    %v755 = vpop.f32.mrb[0].mxu0
    %756 = vdwg.mxu0
    %758 = vrot.lane.b32.xlu0 %v754, 16
    %v759 = vpop.permute.xlu0 %758
    %761 = vst.msk [vmem:[#allocation2] sm:$0xff] %vm680, %v759
    %762 = vrot.lane.b32.xlu0 %v218, 104
    %v763 = vpop.permute.xlu0 %762
    %764 = vrot.lane.b32.xlu0 %v240, 72
    %v765 = vpop.permute.xlu0 %764
    %v766 = vsel %vm246, %v763, 0
    %v768 = vsel %vm246, %v765, 0
    %770 = vmatprep.subr.mxu0 0.0
    %771 = vmatpush1.xpose.msra.mxu0 %v768
    %772 = vmatprep.subr.mxu0 0.0
    %773 = vmatpush1.xpose.msra.mxu0 0.0
    %774 = vmatprep.subr.mxu0 0.0
    %775 = vmatpush1.xpose.msra.mxu0 0.0
    %776 = vmatprep.subr.mxu0 0.0
    %777 = vmatpush1.xpose.msra.mxu0 0.0
    %778 = vmatprep.subr.mxu0 0.0
    %779 = vmatpush1.xpose.msra.mxu0 0.0
    %780 = vmatprep.subr.mxu0 0.0
    %781 = vmatpush1.xpose.msra.mxu0 0.0
    %782 = vmatprep.subr.mxu0 0.0
    %783 = vmatpush1.xpose.msra.mxu0 0.0
    %784 = vmatprep.subr.mxu0 0.0
    %785 = vmatpush1.xpose.msra.mxu0 0.0
    %786 = vmatprep.subr.mxu0 0.0
    %787 = vmatpush1.xpose.msra.mxu0 0.0
    %788 = vmatprep.subr.mxu0 0.0
    %789 = vmatpush1.xpose.msra.mxu0 0.0
    %790 = vmatprep.subr.mxu0 0.0
    %791 = vmatpush1.xpose.msra.mxu0 0.0
    %792 = vmatprep.subr.mxu0 0.0
    %793 = vmatpush1.xpose.msra.mxu0 0.0
    %794 = vmatprep.subr.mxu0 0.0
    %795 = vmatpush1.xpose.msra.mxu0 0.0
    %796 = vmatprep.subr.mxu0 0.0
    %797 = vmatpush1.xpose.msra.mxu0 0.0
    %798 = vmatprep.subr.mxu0 0.0
    %799 = vmatpush1.xpose.msra.mxu0 0.0
    %800 = vmatprep.subr.mxu0 0.0
    %801 = vmatpush1.xpose.msra.mxu0 0.0
    %802 = vmatprep.subr.mxu0 0.0
    %803 = vmatpush1.xpose.msra.mxu0 0.0
    %804 = vmatprep.subr.mxu0 0.0
    %805 = vmatpush1.xpose.msra.mxu0 0.0
    %806 = vmatprep.subr.mxu0 0.0
    %807 = vmatpush1.xpose.msra.mxu0 0.0
    %808 = vmatprep.subr.mxu0 0.0
    %809 = vmatpush1.xpose.msra.mxu0 0.0
    %810 = vmatprep.subr.mxu0 0.0
    %811 = vmatpush1.xpose.msra.mxu0 0.0
    %812 = vmatprep.subr.mxu0 0.0
    %813 = vmatpush1.xpose.msra.mxu0 0.0
    %814 = vmatprep.subr.mxu0 0.0
    %815 = vmatpush1.xpose.msra.mxu0 0.0
    %816 = vmatprep.subr.mxu0 0.0
    %817 = vmatpush1.xpose.msra.mxu0 0.0
    %818 = vmatprep.subr.mxu0 0.0
    %819 = vmatpush1.xpose.msra.mxu0 0.0
    %820 = vmatprep.subr.mxu0 0.0
    %821 = vmatpush1.xpose.msra.mxu0 0.0
    %822 = vmatprep.subr.mxu0 0.0
    %823 = vmatpush1.xpose.msra.mxu0 0.0
    %824 = vmatprep.subr.mxu0 0.0
    %825 = vmatpush1.xpose.msra.mxu0 0.0
    %826 = vmatprep.subr.mxu0 0.0
    %827 = vmatpush1.xpose.msra.mxu0 0.0
    %828 = vmatprep.subr.mxu0 0.0
    %829 = vmatpush1.xpose.msra.mxu0 0.0
    %830 = vmatprep.subr.mxu0 0.0
    %831 = vmatpush1.xpose.msra.mxu0 0.0
    %832 = vmatprep.subr.mxu0 0.0
    %833 = vmatpush1.xpose.msra.mxu0 0.0
    %834 = vmatprep.mubr.f32.mxu0 0.0
    %835 = vmatmul.mubr.f32.gmra.mrb[0].mxu0 %v766
    %v836 = vpop.f32.mrb[0].mxu0
    %v837 = vadd.f32 %v242, %v836
    %v838 = vpop.f32.mrb[0].mxu0
    %839 = vdwg.mxu0
    %v840 = vsel %vm246, %v837, -inf
    %841 = vmax.xlane.f32.xlu0 %v840
    %v842 = vpop.xlane.xlu0 %841
    %v843 = vsub.f32 %v837, %v842
    %v844 = vmul.f32 %v843, 1.442695
    %v845 = vpow.pop %v844
    %v846 = vsel %vm246, %v845, 0.0
    %847 = vadd.xlane.f32.xlu0 %v846
    %v848 = vpop.xlane.xlu0 %847
    %v849 = vrcp.pop %v848
    %v850 = vmul.f32 %v845, %v849
    %852 = vrot.lane.b32.xlu0 %v850, 24
    %v853 = vpop.permute.xlu0 %852
    %vm855 = vcmask 261312
    %856 = vst.msk [vmem:[#allocation12] sm:$0xff] %vm855, %v853
    %857 = vrot.lane.b32.xlu0 %v184, 40
    %v858 = vpop.permute.xlu0 %857
    %v860 = vsel %vm246, %v850, 0
    %862 = vmatprep.subr.mxu0 0.0
    %863 = vmatpush1.msra.mxu0 %v858
    %864 = vmatprep.subr.mxu0 0.0
    %865 = vmatpush1.msra.mxu0 0.0
    %866 = vmatprep.subr.mxu0 0.0
    %867 = vmatpush1.msra.mxu0 0.0
    %868 = vmatprep.subr.mxu0 0.0
    %869 = vmatpush1.msra.mxu0 0.0
    %870 = vmatprep.subr.mxu0 0.0
    %871 = vmatpush1.msra.mxu0 0.0
    %872 = vmatprep.subr.mxu0 0.0
    %873 = vmatpush1.msra.mxu0 0.0
    %874 = vmatprep.subr.mxu0 0.0
    %875 = vmatpush1.msra.mxu0 0.0
    %876 = vmatprep.subr.mxu0 0.0
    %877 = vmatpush1.msra.mxu0 0.0
    %878 = vmatprep.subr.mxu0 0.0
    %879 = vmatpush1.msra.mxu0 0.0
    %880 = vmatprep.subr.mxu0 0.0
    %881 = vmatpush1.msra.mxu0 0.0
    %882 = vmatprep.subr.mxu0 0.0
    %883 = vmatpush1.msra.mxu0 0.0
    %884 = vmatprep.subr.mxu0 0.0
    %885 = vmatpush1.msra.mxu0 0.0
    %886 = vmatprep.subr.mxu0 0.0
    %887 = vmatpush1.msra.mxu0 0.0
    %888 = vmatprep.subr.mxu0 0.0
    %889 = vmatpush1.msra.mxu0 0.0
    %890 = vmatprep.subr.mxu0 0.0
    %891 = vmatpush1.msra.mxu0 0.0
    %892 = vmatprep.subr.mxu0 0.0
    %893 = vmatpush1.msra.mxu0 0.0
    %894 = vmatprep.subr.mxu0 0.0
    %895 = vmatpush1.msra.mxu0 0.0
    %896 = vmatprep.subr.mxu0 0.0
    %897 = vmatpush1.msra.mxu0 0.0
    %898 = vmatprep.subr.mxu0 0.0
    %899 = vmatpush1.msra.mxu0 0.0
    %900 = vmatprep.subr.mxu0 0.0
    %901 = vmatpush1.msra.mxu0 0.0
    %902 = vmatprep.subr.mxu0 0.0
    %903 = vmatpush1.msra.mxu0 0.0
    %904 = vmatprep.subr.mxu0 0.0
    %905 = vmatpush1.msra.mxu0 0.0
    %906 = vmatprep.subr.mxu0 0.0
    %907 = vmatpush1.msra.mxu0 0.0
    %908 = vmatprep.subr.mxu0 0.0
    %909 = vmatpush1.msra.mxu0 0.0
    %910 = vmatprep.subr.mxu0 0.0
    %911 = vmatpush1.msra.mxu0 0.0
    %912 = vmatprep.subr.mxu0 0.0
    %913 = vmatpush1.msra.mxu0 0.0
    %914 = vmatprep.subr.mxu0 0.0
    %915 = vmatpush1.msra.mxu0 0.0
    %916 = vmatprep.subr.mxu0 0.0
    %917 = vmatpush1.msra.mxu0 0.0
    %918 = vmatprep.subr.mxu0 0.0
    %919 = vmatpush1.msra.mxu0 0.0
    %920 = vmatprep.subr.mxu0 0.0
    %921 = vmatpush1.msra.mxu0 0.0
    %922 = vmatprep.subr.mxu0 0.0
    %923 = vmatpush1.msra.mxu0 0.0
    %924 = vmatprep.subr.mxu0 0.0
    %925 = vmatpush1.msra.mxu0 0.0
    %926 = vmatprep.mubr.f32.mxu0 0.0
    %927 = vmatmul.mubr.f32.gmra.mrb[0].mxu0 %v860
    %v928 = vpop.f32.mrb[0].mxu0
    %v929 = vadd.f32 0.0, %v928
    %v930 = vpop.f32.mrb[0].mxu0
    %931 = vdwg.mxu0
    %933 = vrot.lane.b32.xlu0 %v929, 24
    %v934 = vpop.permute.xlu0 %933
    %936 = vst.msk [vmem:[#allocation2] sm:$0xff] %vm855, %v934
    %v937 = vld [vmem:[%s5 + $0x8] sm:$0xff]
    %939 = vrot.lane.b32.xlu0 %v241, 96
    %v940 = vpop.permute.xlu0 %939
    %v942 = vsel %vm246, %v219, 0
    %v944 = vsel %vm246, %v940, 0
    %946 = vmatprep.subr.mxu0 0.0
    %947 = vmatpush1.xpose.msra.mxu0 %v944
    %948 = vmatprep.subr.mxu0 0.0
    %949 = vmatpush1.xpose.msra.mxu0 0.0
    %950 = vmatprep.subr.mxu0 0.0
    %951 = vmatpush1.xpose.msra.mxu0 0.0
    %952 = vmatprep.subr.mxu0 0.0
    %953 = vmatpush1.xpose.msra.mxu0 0.0
    %954 = vmatprep.subr.mxu0 0.0
    %955 = vmatpush1.xpose.msra.mxu0 0.0
    %956 = vmatprep.subr.mxu0 0.0
    %957 = vmatpush1.xpose.msra.mxu0 0.0
    %958 = vmatprep.subr.mxu0 0.0
    %959 = vmatpush1.xpose.msra.mxu0 0.0
    %960 = vmatprep.subr.mxu0 0.0
    %961 = vmatpush1.xpose.msra.mxu0 0.0
    %962 = vmatprep.subr.mxu0 0.0
    %963 = vmatpush1.xpose.msra.mxu0 0.0
    %964 = vmatprep.subr.mxu0 0.0
    %965 = vmatpush1.xpose.msra.mxu0 0.0
    %966 = vmatprep.subr.mxu0 0.0
    %967 = vmatpush1.xpose.msra.mxu0 0.0
    %968 = vmatprep.subr.mxu0 0.0
    %969 = vmatpush1.xpose.msra.mxu0 0.0
    %970 = vmatprep.subr.mxu0 0.0
    %971 = vmatpush1.xpose.msra.mxu0 0.0
    %972 = vmatprep.subr.mxu0 0.0
    %973 = vmatpush1.xpose.msra.mxu0 0.0
    %974 = vmatprep.subr.mxu0 0.0
    %975 = vmatpush1.xpose.msra.mxu0 0.0
    %976 = vmatprep.subr.mxu0 0.0
    %977 = vmatpush1.xpose.msra.mxu0 0.0
    %978 = vmatprep.subr.mxu0 0.0
    %979 = vmatpush1.xpose.msra.mxu0 0.0
    %980 = vmatprep.subr.mxu0 0.0
    %981 = vmatpush1.xpose.msra.mxu0 0.0
    %982 = vmatprep.subr.mxu0 0.0
    %983 = vmatpush1.xpose.msra.mxu0 0.0
    %984 = vmatprep.subr.mxu0 0.0
    %985 = vmatpush1.xpose.msra.mxu0 0.0
    %986 = vmatprep.subr.mxu0 0.0
    %987 = vmatpush1.xpose.msra.mxu0 0.0
    %988 = vmatprep.subr.mxu0 0.0
    %989 = vmatpush1.xpose.msra.mxu0 0.0
    %990 = vmatprep.subr.mxu0 0.0
    %991 = vmatpush1.xpose.msra.mxu0 0.0
    %992 = vmatprep.subr.mxu0 0.0
    %993 = vmatpush1.xpose.msra.mxu0 0.0
    %994 = vmatprep.subr.mxu0 0.0
    %995 = vmatpush1.xpose.msra.mxu0 0.0
    %996 = vmatprep.subr.mxu0 0.0
    %997 = vmatpush1.xpose.msra.mxu0 0.0
    %998 = vmatprep.subr.mxu0 0.0
    %999 = vmatpush1.xpose.msra.mxu0 0.0
    %1000 = vmatprep.subr.mxu0 0.0
    %1001 = vmatpush1.xpose.msra.mxu0 0.0
    %1002 = vmatprep.subr.mxu0 0.0
    %1003 = vmatpush1.xpose.msra.mxu0 0.0
    %1004 = vmatprep.subr.mxu0 0.0
    %1005 = vmatpush1.xpose.msra.mxu0 0.0
    %1006 = vmatprep.subr.mxu0 0.0
    %1007 = vmatpush1.xpose.msra.mxu0 0.0
    %1008 = vmatprep.subr.mxu0 0.0
    %1009 = vmatpush1.xpose.msra.mxu0 0.0
    %1010 = vmatprep.mubr.f32.mxu0 0.0
    %1011 = vmatmul.mubr.f32.gmra.mrb[0].mxu0 %v942
    %v1012 = vpop.f32.mrb[0].mxu0
    %v1013 = vadd.f32 %v937, %v1012
    %v1014 = vpop.f32.mrb[0].mxu0
    %1015 = vdwg.mxu0
    %v1016 = vsel %vm246, %v1013, -inf
    %1017 = vmax.xlane.f32.xlu0 %v1016
    %v1018 = vpop.xlane.xlu0 %1017
    %v1019 = vsub.f32 %v1013, %v1018
    %v1020 = vmul.f32 %v1019, 1.442695
    %v1021 = vpow.pop %v1020
    %v1022 = vsel %vm246, %v1021, 0.0
    %1023 = vadd.xlane.f32.xlu0 %v1022
    %v1024 = vpop.xlane.xlu0 %1023
    %v1025 = vrcp.pop %v1024
    %v1026 = vmul.f32 %v1021, %v1025
    %1027 = vst.msk [vmem:[#allocation12 + $0x8] sm:$0xff] %vm246, %v1026
    %1029 = vrot.lane.b32.xlu0 %v190, 64
    %v1030 = vpop.permute.xlu0 %1029
    %v1033 = vsel %vm246, %v1026, 0
    %1035 = vmatprep.subr.mxu0 0.0
    %1036 = vmatpush1.msra.mxu0 %v1030
    %1037 = vmatprep.subr.mxu0 0.0
    %1038 = vmatpush1.msra.mxu0 0.0
    %1039 = vmatprep.subr.mxu0 0.0
    %1040 = vmatpush1.msra.mxu0 0.0
    %1041 = vmatprep.subr.mxu0 0.0
    %1042 = vmatpush1.msra.mxu0 0.0
    %1043 = vmatprep.subr.mxu0 0.0
    %1044 = vmatpush1.msra.mxu0 0.0
    %1045 = vmatprep.subr.mxu0 0.0
    %1046 = vmatpush1.msra.mxu0 0.0
    %1047 = vmatprep.subr.mxu0 0.0
    %1048 = vmatpush1.msra.mxu0 0.0
    %1049 = vmatprep.subr.mxu0 0.0
    %1050 = vmatpush1.msra.mxu0 0.0
    %1051 = vmatprep.subr.mxu0 0.0
    %1052 = vmatpush1.msra.mxu0 0.0
    %1053 = vmatprep.subr.mxu0 0.0
    %1054 = vmatpush1.msra.mxu0 0.0
    %1055 = vmatprep.subr.mxu0 0.0
    %1056 = vmatpush1.msra.mxu0 0.0
    %1057 = vmatprep.subr.mxu0 0.0
    %1058 = vmatpush1.msra.mxu0 0.0
    %1059 = vmatprep.subr.mxu0 0.0
    %1060 = vmatpush1.msra.mxu0 0.0
    %1061 = vmatprep.subr.mxu0 0.0
    %1062 = vmatpush1.msra.mxu0 0.0
    %1063 = vmatprep.subr.mxu0 0.0
    %1064 = vmatpush1.msra.mxu0 0.0
    %1065 = vmatprep.subr.mxu0 0.0
    %1066 = vmatpush1.msra.mxu0 0.0
    %1067 = vmatprep.subr.mxu0 0.0
    %1068 = vmatpush1.msra.mxu0 0.0
    %1069 = vmatprep.subr.mxu0 0.0
    %1070 = vmatpush1.msra.mxu0 0.0
    %1071 = vmatprep.subr.mxu0 0.0
    %1072 = vmatpush1.msra.mxu0 0.0
    %1073 = vmatprep.subr.mxu0 0.0
    %1074 = vmatpush1.msra.mxu0 0.0
    %1075 = vmatprep.subr.mxu0 0.0
    %1076 = vmatpush1.msra.mxu0 0.0
    %1077 = vmatprep.subr.mxu0 0.0
    %1078 = vmatpush1.msra.mxu0 0.0
    %1079 = vmatprep.subr.mxu0 0.0
    %1080 = vmatpush1.msra.mxu0 0.0
    %1081 = vmatprep.subr.mxu0 0.0
    %1082 = vmatpush1.msra.mxu0 0.0
    %1083 = vmatprep.subr.mxu0 0.0
    %1084 = vmatpush1.msra.mxu0 0.0
    %1085 = vmatprep.subr.mxu0 0.0
    %1086 = vmatpush1.msra.mxu0 0.0
    %1087 = vmatprep.subr.mxu0 0.0
    %1088 = vmatpush1.msra.mxu0 0.0
    %1089 = vmatprep.subr.mxu0 0.0
    %1090 = vmatpush1.msra.mxu0 0.0
    %1091 = vmatprep.subr.mxu0 0.0
    %1092 = vmatpush1.msra.mxu0 0.0
    %1093 = vmatprep.subr.mxu0 0.0
    %1094 = vmatpush1.msra.mxu0 0.0
    %1095 = vmatprep.subr.mxu0 0.0
    %1096 = vmatpush1.msra.mxu0 0.0
    %1097 = vmatprep.subr.mxu0 0.0
    %1098 = vmatpush1.msra.mxu0 0.0
    %1099 = vmatprep.mubr.f32.mxu0 0.0
    %1100 = vmatmul.mubr.f32.gmra.mrb[0].mxu0 %v1033
    %v1101 = vpop.f32.mrb[0].mxu0
    %v1102 = vadd.f32 0.0, %v1101
    %v1103 = vpop.f32.mrb[0].mxu0
    %1104 = vdwg.mxu0
    %1105 = vst.msk [vmem:[#allocation2 + $0x8] sm:$0xff] %vm246, %v1102
    %1106 = vrot.lane.b32.xlu0 %v219, 120
    %v1107 = vpop.permute.xlu0 %1106
    %1108 = vrot.lane.b32.xlu0 %v241, 88
    %v1109 = vpop.permute.xlu0 %1108
    %v1110 = vsel %vm246, %v1107, 0
    %v1112 = vsel %vm246, %v1109, 0
    %1114 = vmatprep.subr.mxu0 0.0
    %1115 = vmatpush1.xpose.msra.mxu0 %v1112
    %1116 = vmatprep.subr.mxu0 0.0
    %1117 = vmatpush1.xpose.msra.mxu0 0.0
    %1118 = vmatprep.subr.mxu0 0.0
    %1119 = vmatpush1.xpose.msra.mxu0 0.0
    %1120 = vmatprep.subr.mxu0 0.0
    %1121 = vmatpush1.xpose.msra.mxu0 0.0
    %1122 = vmatprep.subr.mxu0 0.0
    %1123 = vmatpush1.xpose.msra.mxu0 0.0
    %1124 = vmatprep.subr.mxu0 0.0
    %1125 = vmatpush1.xpose.msra.mxu0 0.0
    %1126 = vmatprep.subr.mxu0 0.0
    %1127 = vmatpush1.xpose.msra.mxu0 0.0
    %1128 = vmatprep.subr.mxu0 0.0
    %1129 = vmatpush1.xpose.msra.mxu0 0.0
    %1130 = vmatprep.subr.mxu0 0.0
    %1131 = vmatpush1.xpose.msra.mxu0 0.0
    %1132 = vmatprep.subr.mxu0 0.0
    %1133 = vmatpush1.xpose.msra.mxu0 0.0
    %1134 = vmatprep.subr.mxu0 0.0
    %1135 = vmatpush1.xpose.msra.mxu0 0.0
    %1136 = vmatprep.subr.mxu0 0.0
    %1137 = vmatpush1.xpose.msra.mxu0 0.0
    %1138 = vmatprep.subr.mxu0 0.0
    %1139 = vmatpush1.xpose.msra.mxu0 0.0
    %1140 = vmatprep.subr.mxu0 0.0
    %1141 = vmatpush1.xpose.msra.mxu0 0.0
    %1142 = vmatprep.subr.mxu0 0.0
    %1143 = vmatpush1.xpose.msra.mxu0 0.0
    %1144 = vmatprep.subr.mxu0 0.0
    %1145 = vmatpush1.xpose.msra.mxu0 0.0
    %1146 = vmatprep.subr.mxu0 0.0
    %1147 = vmatpush1.xpose.msra.mxu0 0.0
    %1148 = vmatprep.subr.mxu0 0.0
    %1149 = vmatpush1.xpose.msra.mxu0 0.0
    %1150 = vmatprep.subr.mxu0 0.0
    %1151 = vmatpush1.xpose.msra.mxu0 0.0
    %1152 = vmatprep.subr.mxu0 0.0
    %1153 = vmatpush1.xpose.msra.mxu0 0.0
    %1154 = vmatprep.subr.mxu0 0.0
    %1155 = vmatpush1.xpose.msra.mxu0 0.0
    %1156 = vmatprep.subr.mxu0 0.0
    %1157 = vmatpush1.xpose.msra.mxu0 0.0
    %1158 = vmatprep.subr.mxu0 0.0
    %1159 = vmatpush1.xpose.msra.mxu0 0.0
    %1160 = vmatprep.subr.mxu0 0.0
    %1161 = vmatpush1.xpose.msra.mxu0 0.0
    %1162 = vmatprep.subr.mxu0 0.0
    %1163 = vmatpush1.xpose.msra.mxu0 0.0
    %1164 = vmatprep.subr.mxu0 0.0
    %1165 = vmatpush1.xpose.msra.mxu0 0.0
    %1166 = vmatprep.subr.mxu0 0.0
    %1167 = vmatpush1.xpose.msra.mxu0 0.0
    %1168 = vmatprep.subr.mxu0 0.0
    %1169 = vmatpush1.xpose.msra.mxu0 0.0
    %1170 = vmatprep.subr.mxu0 0.0
    %1171 = vmatpush1.xpose.msra.mxu0 0.0
    %1172 = vmatprep.subr.mxu0 0.0
    %1173 = vmatpush1.xpose.msra.mxu0 0.0
    %1174 = vmatprep.subr.mxu0 0.0
    %1175 = vmatpush1.xpose.msra.mxu0 0.0
    %1176 = vmatprep.subr.mxu0 0.0
    %1177 = vmatpush1.xpose.msra.mxu0 0.0
    %1178 = vmatprep.mubr.f32.mxu0 0.0
    %1179 = vmatmul.mubr.f32.gmra.mrb[0].mxu0 %v1110
    %v1180 = vpop.f32.mrb[0].mxu0
    %v1181 = vadd.f32 %v937, %v1180
    %v1182 = vpop.f32.mrb[0].mxu0
    %1183 = vdwg.mxu0
    %v1184 = vsel %vm246, %v1181, -inf
    %1185 = vmax.xlane.f32.xlu0 %v1184
    %v1186 = vpop.xlane.xlu0 %1185
    %v1187 = vsub.f32 %v1181, %v1186
    %v1188 = vmul.f32 %v1187, 1.442695
    %v1189 = vpow.pop %v1188
    %v1190 = vsel %vm246, %v1189, 0.0
    %1191 = vadd.xlane.f32.xlu0 %v1190
    %v1192 = vpop.xlane.xlu0 %1191
    %v1193 = vrcp.pop %v1192
    %v1194 = vmul.f32 %v1189, %v1193
    %1196 = vrot.lane.b32.xlu0 %v1194, 8
    %v1197 = vpop.permute.xlu0 %1196
    %1199 = vst.msk [vmem:[#allocation12 + $0x8] sm:$0xff] %vm505, %v1197
    %1200 = vrot.lane.b32.xlu0 %v190, 56
    %v1201 = vpop.permute.xlu0 %1200
    %v1203 = vsel %vm246, %v1194, 0
    %1205 = vmatprep.subr.mxu0 0.0
    %1206 = vmatpush1.msra.mxu0 %v1201
    %1207 = vmatprep.subr.mxu0 0.0
    %1208 = vmatpush1.msra.mxu0 0.0
    %1209 = vmatprep.subr.mxu0 0.0
    %1210 = vmatpush1.msra.mxu0 0.0
    %1211 = vmatprep.subr.mxu0 0.0
    %1212 = vmatpush1.msra.mxu0 0.0
    %1213 = vmatprep.subr.mxu0 0.0
    %1214 = vmatpush1.msra.mxu0 0.0
    %1215 = vmatprep.subr.mxu0 0.0
    %1216 = vmatpush1.msra.mxu0 0.0
    %1217 = vmatprep.subr.mxu0 0.0
    %1218 = vmatpush1.msra.mxu0 0.0
    %1219 = vmatprep.subr.mxu0 0.0
    %1220 = vmatpush1.msra.mxu0 0.0
    %1221 = vmatprep.subr.mxu0 0.0
    %1222 = vmatpush1.msra.mxu0 0.0
    %1223 = vmatprep.subr.mxu0 0.0
    %1224 = vmatpush1.msra.mxu0 0.0
    %1225 = vmatprep.subr.mxu0 0.0
    %1226 = vmatpush1.msra.mxu0 0.0
    %1227 = vmatprep.subr.mxu0 0.0
    %1228 = vmatpush1.msra.mxu0 0.0
    %1229 = vmatprep.subr.mxu0 0.0
    %1230 = vmatpush1.msra.mxu0 0.0
    %1231 = vmatprep.subr.mxu0 0.0
    %1232 = vmatpush1.msra.mxu0 0.0
    %1233 = vmatprep.subr.mxu0 0.0
    %1234 = vmatpush1.msra.mxu0 0.0
    %1235 = vmatprep.subr.mxu0 0.0
    %1236 = vmatpush1.msra.mxu0 0.0
    %1237 = vmatprep.subr.mxu0 0.0
    %1238 = vmatpush1.msra.mxu0 0.0
    %1239 = vmatprep.subr.mxu0 0.0
    %1240 = vmatpush1.msra.mxu0 0.0
    %1241 = vmatprep.subr.mxu0 0.0
    %1242 = vmatpush1.msra.mxu0 0.0
    %1243 = vmatprep.subr.mxu0 0.0
    %1244 = vmatpush1.msra.mxu0 0.0
    %1245 = vmatprep.subr.mxu0 0.0
    %1246 = vmatpush1.msra.mxu0 0.0
    %1247 = vmatprep.subr.mxu0 0.0
    %1248 = vmatpush1.msra.mxu0 0.0
    %1249 = vmatprep.subr.mxu0 0.0
    %1250 = vmatpush1.msra.mxu0 0.0
    %1251 = vmatprep.subr.mxu0 0.0
    %1252 = vmatpush1.msra.mxu0 0.0
    %1253 = vmatprep.subr.mxu0 0.0
    %1254 = vmatpush1.msra.mxu0 0.0
    %1255 = vmatprep.subr.mxu0 0.0
    %1256 = vmatpush1.msra.mxu0 0.0
    %1257 = vmatprep.subr.mxu0 0.0
    %1258 = vmatpush1.msra.mxu0 0.0
    %1259 = vmatprep.subr.mxu0 0.0
    %1260 = vmatpush1.msra.mxu0 0.0
    %1261 = vmatprep.subr.mxu0 0.0
    %1262 = vmatpush1.msra.mxu0 0.0
    %1263 = vmatprep.subr.mxu0 0.0
    %1264 = vmatpush1.msra.mxu0 0.0
    %1265 = vmatprep.subr.mxu0 0.0
    %1266 = vmatpush1.msra.mxu0 0.0
    %1267 = vmatprep.subr.mxu0 0.0
    %1268 = vmatpush1.msra.mxu0 0.0
    %1269 = vmatprep.mubr.f32.mxu0 0.0
    %1270 = vmatmul.mubr.f32.gmra.mrb[0].mxu0 %v1203
    %v1271 = vpop.f32.mrb[0].mxu0
    %v1272 = vadd.f32 0.0, %v1271
    %v1273 = vpop.f32.mrb[0].mxu0
    %1274 = vdwg.mxu0
    %1276 = vrot.lane.b32.xlu0 %v1272, 8
    %v1277 = vpop.permute.xlu0 %1276
    %1279 = vst.msk [vmem:[#allocation2 + $0x8] sm:$0xff] %vm505, %v1277
    %1280 = vrot.lane.b32.xlu0 %v219, 112
    %v1281 = vpop.permute.xlu0 %1280
    %1282 = vrot.lane.b32.xlu0 %v241, 80
    %v1283 = vpop.permute.xlu0 %1282
    %v1284 = vsel %vm246, %v1281, 0
    %v1286 = vsel %vm246, %v1283, 0
    %1288 = vmatprep.subr.mxu0 0.0
    %1289 = vmatpush1.xpose.msra.mxu0 %v1286
    %1290 = vmatprep.subr.mxu0 0.0
    %1291 = vmatpush1.xpose.msra.mxu0 0.0
    %1292 = vmatprep.subr.mxu0 0.0
    %1293 = vmatpush1.xpose.msra.mxu0 0.0
    %1294 = vmatprep.subr.mxu0 0.0
    %1295 = vmatpush1.xpose.msra.mxu0 0.0
    %1296 = vmatprep.subr.mxu0 0.0
    %1297 = vmatpush1.xpose.msra.mxu0 0.0
    %1298 = vmatprep.subr.mxu0 0.0
    %1299 = vmatpush1.xpose.msra.mxu0 0.0
    %1300 = vmatprep.subr.mxu0 0.0
    %1301 = vmatpush1.xpose.msra.mxu0 0.0
    %1302 = vmatprep.subr.mxu0 0.0
    %1303 = vmatpush1.xpose.msra.mxu0 0.0
    %1304 = vmatprep.subr.mxu0 0.0
    %1305 = vmatpush1.xpose.msra.mxu0 0.0
    %1306 = vmatprep.subr.mxu0 0.0
    %1307 = vmatpush1.xpose.msra.mxu0 0.0
    %1308 = vmatprep.subr.mxu0 0.0
    %1309 = vmatpush1.xpose.msra.mxu0 0.0
    %1310 = vmatprep.subr.mxu0 0.0
    %1311 = vmatpush1.xpose.msra.mxu0 0.0
    %1312 = vmatprep.subr.mxu0 0.0
    %1313 = vmatpush1.xpose.msra.mxu0 0.0
    %1314 = vmatprep.subr.mxu0 0.0
    %1315 = vmatpush1.xpose.msra.mxu0 0.0
    %1316 = vmatprep.subr.mxu0 0.0
    %1317 = vmatpush1.xpose.msra.mxu0 0.0
    %1318 = vmatprep.subr.mxu0 0.0
    %1319 = vmatpush1.xpose.msra.mxu0 0.0
    %1320 = vmatprep.subr.mxu0 0.0
    %1321 = vmatpush1.xpose.msra.mxu0 0.0
    %1322 = vmatprep.subr.mxu0 0.0
    %1323 = vmatpush1.xpose.msra.mxu0 0.0
    %1324 = vmatprep.subr.mxu0 0.0
    %1325 = vmatpush1.xpose.msra.mxu0 0.0
    %1326 = vmatprep.subr.mxu0 0.0
    %1327 = vmatpush1.xpose.msra.mxu0 0.0
    %1328 = vmatprep.subr.mxu0 0.0
    %1329 = vmatpush1.xpose.msra.mxu0 0.0
    %1330 = vmatprep.subr.mxu0 0.0
    %1331 = vmatpush1.xpose.msra.mxu0 0.0
    %1332 = vmatprep.subr.mxu0 0.0
    %1333 = vmatpush1.xpose.msra.mxu0 0.0
    %1334 = vmatprep.subr.mxu0 0.0
    %1335 = vmatpush1.xpose.msra.mxu0 0.0
    %1336 = vmatprep.subr.mxu0 0.0
    %1337 = vmatpush1.xpose.msra.mxu0 0.0
    %1338 = vmatprep.subr.mxu0 0.0
    %1339 = vmatpush1.xpose.msra.mxu0 0.0
    %1340 = vmatprep.subr.mxu0 0.0
    %1341 = vmatpush1.xpose.msra.mxu0 0.0
    %1342 = vmatprep.subr.mxu0 0.0
    %1343 = vmatpush1.xpose.msra.mxu0 0.0
    %1344 = vmatprep.subr.mxu0 0.0
    %1345 = vmatpush1.xpose.msra.mxu0 0.0
    %1346 = vmatprep.subr.mxu0 0.0
    %1347 = vmatpush1.xpose.msra.mxu0 0.0
    %1348 = vmatprep.subr.mxu0 0.0
    %1349 = vmatpush1.xpose.msra.mxu0 0.0
    %1350 = vmatprep.subr.mxu0 0.0
    %1351 = vmatpush1.xpose.msra.mxu0 0.0
    %1352 = vmatprep.mubr.f32.mxu0 0.0
    %1353 = vmatmul.mubr.f32.gmra.mrb[0].mxu0 %v1284
    %v1354 = vpop.f32.mrb[0].mxu0
    %v1355 = vadd.f32 %v937, %v1354
    %v1356 = vpop.f32.mrb[0].mxu0
    %1357 = vdwg.mxu0
    %v1358 = vsel %vm246, %v1355, -inf
    %1359 = vmax.xlane.f32.xlu0 %v1358
    %v1360 = vpop.xlane.xlu0 %1359
    %v1361 = vsub.f32 %v1355, %v1360
    %v1362 = vmul.f32 %v1361, 1.442695
    %v1363 = vpow.pop %v1362
    %v1364 = vsel %vm246, %v1363, 0.0
    %1365 = vadd.xlane.f32.xlu0 %v1364
    %v1366 = vpop.xlane.xlu0 %1365
    %v1367 = vrcp.pop %v1366
    %v1368 = vmul.f32 %v1363, %v1367
    %1370 = vrot.lane.b32.xlu0 %v1368, 16
    %v1371 = vpop.permute.xlu0 %1370
    %1373 = vst.msk [vmem:[#allocation12 + $0x8] sm:$0xff] %vm680, %v1371
    %1374 = vrot.lane.b32.xlu0 %v190, 48
    %v1375 = vpop.permute.xlu0 %1374
    %v1377 = vsel %vm246, %v1368, 0
    %1379 = vmatprep.subr.mxu0 0.0
    %1380 = vmatpush1.msra.mxu0 %v1375
    %1381 = vmatprep.subr.mxu0 0.0
    %1382 = vmatpush1.msra.mxu0 0.0
    %1383 = vmatprep.subr.mxu0 0.0
    %1384 = vmatpush1.msra.mxu0 0.0
    %1385 = vmatprep.subr.mxu0 0.0
    %1386 = vmatpush1.msra.mxu0 0.0
    %1387 = vmatprep.subr.mxu0 0.0
    %1388 = vmatpush1.msra.mxu0 0.0
    %1389 = vmatprep.subr.mxu0 0.0
    %1390 = vmatpush1.msra.mxu0 0.0
    %1391 = vmatprep.subr.mxu0 0.0
    %1392 = vmatpush1.msra.mxu0 0.0
    %1393 = vmatprep.subr.mxu0 0.0
    %1394 = vmatpush1.msra.mxu0 0.0
    %1395 = vmatprep.subr.mxu0 0.0
    %1396 = vmatpush1.msra.mxu0 0.0
    %1397 = vmatprep.subr.mxu0 0.0
    %1398 = vmatpush1.msra.mxu0 0.0
    %1399 = vmatprep.subr.mxu0 0.0
    %1400 = vmatpush1.msra.mxu0 0.0
    %1401 = vmatprep.subr.mxu0 0.0
    %1402 = vmatpush1.msra.mxu0 0.0
    %1403 = vmatprep.subr.mxu0 0.0
    %1404 = vmatpush1.msra.mxu0 0.0
    %1405 = vmatprep.subr.mxu0 0.0
    %1406 = vmatpush1.msra.mxu0 0.0
    %1407 = vmatprep.subr.mxu0 0.0
    %1408 = vmatpush1.msra.mxu0 0.0
    %1409 = vmatprep.subr.mxu0 0.0
    %1410 = vmatpush1.msra.mxu0 0.0
    %1411 = vmatprep.subr.mxu0 0.0
    %1412 = vmatpush1.msra.mxu0 0.0
    %1413 = vmatprep.subr.mxu0 0.0
    %1414 = vmatpush1.msra.mxu0 0.0
    %1415 = vmatprep.subr.mxu0 0.0
    %1416 = vmatpush1.msra.mxu0 0.0
    %1417 = vmatprep.subr.mxu0 0.0
    %1418 = vmatpush1.msra.mxu0 0.0
    %1419 = vmatprep.subr.mxu0 0.0
    %1420 = vmatpush1.msra.mxu0 0.0
    %1421 = vmatprep.subr.mxu0 0.0
    %1422 = vmatpush1.msra.mxu0 0.0
    %1423 = vmatprep.subr.mxu0 0.0
    %1424 = vmatpush1.msra.mxu0 0.0
    %1425 = vmatprep.subr.mxu0 0.0
    %1426 = vmatpush1.msra.mxu0 0.0
    %1427 = vmatprep.subr.mxu0 0.0
    %1428 = vmatpush1.msra.mxu0 0.0
    %1429 = vmatprep.subr.mxu0 0.0
    %1430 = vmatpush1.msra.mxu0 0.0
    %1431 = vmatprep.subr.mxu0 0.0
    %1432 = vmatpush1.msra.mxu0 0.0
    %1433 = vmatprep.subr.mxu0 0.0
    %1434 = vmatpush1.msra.mxu0 0.0
    %1435 = vmatprep.subr.mxu0 0.0
    %1436 = vmatpush1.msra.mxu0 0.0
    %1437 = vmatprep.subr.mxu0 0.0
    %1438 = vmatpush1.msra.mxu0 0.0
    %1439 = vmatprep.subr.mxu0 0.0
    %1440 = vmatpush1.msra.mxu0 0.0
    %1441 = vmatprep.subr.mxu0 0.0
    %1442 = vmatpush1.msra.mxu0 0.0
    %1443 = vmatprep.mubr.f32.mxu0 0.0
    %1444 = vmatmul.mubr.f32.gmra.mrb[0].mxu0 %v1377
    %v1445 = vpop.f32.mrb[0].mxu0
    %v1446 = vadd.f32 0.0, %v1445
    %v1447 = vpop.f32.mrb[0].mxu0
    %1448 = vdwg.mxu0
    %1450 = vrot.lane.b32.xlu0 %v1446, 16
    %v1451 = vpop.permute.xlu0 %1450
    %1453 = vst.msk [vmem:[#allocation2 + $0x8] sm:$0xff] %vm680, %v1451
    %1454 = vrot.lane.b32.xlu0 %v219, 104
    %v1455 = vpop.permute.xlu0 %1454
    %1456 = vrot.lane.b32.xlu0 %v241, 72
    %v1457 = vpop.permute.xlu0 %1456
    %v1458 = vsel %vm246, %v1455, 0
    %v1460 = vsel %vm246, %v1457, 0
    %1462 = vmatprep.subr.mxu0 0.0
    %1463 = vmatpush1.xpose.msra.mxu0 %v1460
    %1464 = vmatprep.subr.mxu0 0.0
    %1465 = vmatpush1.xpose.msra.mxu0 0.0
    %1466 = vmatprep.subr.mxu0 0.0
    %1467 = vmatpush1.xpose.msra.mxu0 0.0
    %1468 = vmatprep.subr.mxu0 0.0
    %1469 = vmatpush1.xpose.msra.mxu0 0.0
    %1470 = vmatprep.subr.mxu0 0.0
    %1471 = vmatpush1.xpose.msra.mxu0 0.0
    %1472 = vmatprep.subr.mxu0 0.0
    %1473 = vmatpush1.xpose.msra.mxu0 0.0
    %1474 = vmatprep.subr.mxu0 0.0
    %1475 = vmatpush1.xpose.msra.mxu0 0.0
    %1476 = vmatprep.subr.mxu0 0.0
    %1477 = vmatpush1.xpose.msra.mxu0 0.0
    %1478 = vmatprep.subr.mxu0 0.0
    %1479 = vmatpush1.xpose.msra.mxu0 0.0
    %1480 = vmatprep.subr.mxu0 0.0
    %1481 = vmatpush1.xpose.msra.mxu0 0.0
    %1482 = vmatprep.subr.mxu0 0.0
    %1483 = vmatpush1.xpose.msra.mxu0 0.0
    %1484 = vmatprep.subr.mxu0 0.0
    %1485 = vmatpush1.xpose.msra.mxu0 0.0
    %1486 = vmatprep.subr.mxu0 0.0
    %1487 = vmatpush1.xpose.msra.mxu0 0.0
    %1488 = vmatprep.subr.mxu0 0.0
    %1489 = vmatpush1.xpose.msra.mxu0 0.0
    %1490 = vmatprep.subr.mxu0 0.0
    %1491 = vmatpush1.xpose.msra.mxu0 0.0
    %1492 = vmatprep.subr.mxu0 0.0
    %1493 = vmatpush1.xpose.msra.mxu0 0.0
    %1494 = vmatprep.subr.mxu0 0.0
    %1495 = vmatpush1.xpose.msra.mxu0 0.0
    %1496 = vmatprep.subr.mxu0 0.0
    %1497 = vmatpush1.xpose.msra.mxu0 0.0
    %1498 = vmatprep.subr.mxu0 0.0
    %1499 = vmatpush1.xpose.msra.mxu0 0.0
    %1500 = vmatprep.subr.mxu0 0.0
    %1501 = vmatpush1.xpose.msra.mxu0 0.0
    %1502 = vmatprep.subr.mxu0 0.0
    %1503 = vmatpush1.xpose.msra.mxu0 0.0
    %1504 = vmatprep.subr.mxu0 0.0
    %1505 = vmatpush1.xpose.msra.mxu0 0.0
    %1506 = vmatprep.subr.mxu0 0.0
    %1507 = vmatpush1.xpose.msra.mxu0 0.0
    %1508 = vmatprep.subr.mxu0 0.0
    %1509 = vmatpush1.xpose.msra.mxu0 0.0
    %1510 = vmatprep.subr.mxu0 0.0
    %1511 = vmatpush1.xpose.msra.mxu0 0.0
    %1512 = vmatprep.subr.mxu0 0.0
    %1513 = vmatpush1.xpose.msra.mxu0 0.0
    %1514 = vmatprep.subr.mxu0 0.0
    %1515 = vmatpush1.xpose.msra.mxu0 0.0
    %1516 = vmatprep.subr.mxu0 0.0
    %1517 = vmatpush1.xpose.msra.mxu0 0.0
    %1518 = vmatprep.subr.mxu0 0.0
    %1519 = vmatpush1.xpose.msra.mxu0 0.0
    %1520 = vmatprep.subr.mxu0 0.0
    %1521 = vmatpush1.xpose.msra.mxu0 0.0
    %1522 = vmatprep.subr.mxu0 0.0
    %1523 = vmatpush1.xpose.msra.mxu0 0.0
    %1524 = vmatprep.subr.mxu0 0.0
    %1525 = vmatpush1.xpose.msra.mxu0 0.0
    %1526 = vmatprep.mubr.f32.mxu0 0.0
    %1527 = vmatmul.mubr.f32.gmra.mrb[0].mxu0 %v1458
    %v1528 = vpop.f32.mrb[0].mxu0
    %v1529 = vadd.f32 %v937, %v1528
    %v1530 = vpop.f32.mrb[0].mxu0
    %1531 = vdwg.mxu0
    %v1532 = vsel %vm246, %v1529, -inf
    %1533 = vmax.xlane.f32.xlu0 %v1532
    %v1534 = vpop.xlane.xlu0 %1533
    %v1535 = vsub.f32 %v1529, %v1534
    %v1536 = vmul.f32 %v1535, 1.442695
    %v1537 = vpow.pop %v1536
    %v1538 = vsel %vm246, %v1537, 0.0
    %1539 = vadd.xlane.f32.xlu0 %v1538
    %v1540 = vpop.xlane.xlu0 %1539
    %v1541 = vrcp.pop %v1540
    %v1542 = vmul.f32 %v1537, %v1541
    %1544 = vrot.lane.b32.xlu0 %v1542, 24
    %v1545 = vpop.permute.xlu0 %1544
    %1547 = vst.msk [vmem:[#allocation12 + $0x8] sm:$0xff] %vm855, %v1545
    %1548 = vrot.lane.b32.xlu0 %v190, 40
    %v1549 = vpop.permute.xlu0 %1548
    %v1551 = vsel %vm246, %v1542, 0
    %1553 = vmatprep.subr.mxu0 0.0
    %1554 = vmatpush1.msra.mxu0 %v1549
    %1555 = vmatprep.subr.mxu0 0.0
    %1556 = vmatpush1.msra.mxu0 0.0
    %1557 = vmatprep.subr.mxu0 0.0
    %1558 = vmatpush1.msra.mxu0 0.0
    %1559 = vmatprep.subr.mxu0 0.0
    %1560 = vmatpush1.msra.mxu0 0.0
    %1561 = vmatprep.subr.mxu0 0.0
    %1562 = vmatpush1.msra.mxu0 0.0
    %1563 = vmatprep.subr.mxu0 0.0
    %1564 = vmatpush1.msra.mxu0 0.0
    %1565 = vmatprep.subr.mxu0 0.0
    %1566 = vmatpush1.msra.mxu0 0.0
    %1567 = vmatprep.subr.mxu0 0.0
    %1568 = vmatpush1.msra.mxu0 0.0
    %1569 = vmatprep.subr.mxu0 0.0
    %1570 = vmatpush1.msra.mxu0 0.0
    %1571 = vmatprep.subr.mxu0 0.0
    %1572 = vmatpush1.msra.mxu0 0.0
    %1573 = vmatprep.subr.mxu0 0.0
    %1574 = vmatpush1.msra.mxu0 0.0
    %1575 = vmatprep.subr.mxu0 0.0
    %1576 = vmatpush1.msra.mxu0 0.0
    %1577 = vmatprep.subr.mxu0 0.0
    %1578 = vmatpush1.msra.mxu0 0.0
    %1579 = vmatprep.subr.mxu0 0.0
    %1580 = vmatpush1.msra.mxu0 0.0
    %1581 = vmatprep.subr.mxu0 0.0
    %1582 = vmatpush1.msra.mxu0 0.0
    %1583 = vmatprep.subr.mxu0 0.0
    %1584 = vmatpush1.msra.mxu0 0.0
    %1585 = vmatprep.subr.mxu0 0.0
    %1586 = vmatpush1.msra.mxu0 0.0
    %1587 = vmatprep.subr.mxu0 0.0
    %1588 = vmatpush1.msra.mxu0 0.0
    %1589 = vmatprep.subr.mxu0 0.0
    %1590 = vmatpush1.msra.mxu0 0.0
    %1591 = vmatprep.subr.mxu0 0.0
    %1592 = vmatpush1.msra.mxu0 0.0
    %1593 = vmatprep.subr.mxu0 0.0
    %1594 = vmatpush1.msra.mxu0 0.0
    %1595 = vmatprep.subr.mxu0 0.0
    %1596 = vmatpush1.msra.mxu0 0.0
    %1597 = vmatprep.subr.mxu0 0.0
    %1598 = vmatpush1.msra.mxu0 0.0
    %1599 = vmatprep.subr.mxu0 0.0
    %1600 = vmatpush1.msra.mxu0 0.0
    %1601 = vmatprep.subr.mxu0 0.0
    %1602 = vmatpush1.msra.mxu0 0.0
    %1603 = vmatprep.subr.mxu0 0.0
    %1604 = vmatpush1.msra.mxu0 0.0
    %1605 = vmatprep.subr.mxu0 0.0
    %1606 = vmatpush1.msra.mxu0 0.0
    %1607 = vmatprep.subr.mxu0 0.0
    %1608 = vmatpush1.msra.mxu0 0.0
    %1609 = vmatprep.subr.mxu0 0.0
    %1610 = vmatpush1.msra.mxu0 0.0
    %1611 = vmatprep.subr.mxu0 0.0
    %1612 = vmatpush1.msra.mxu0 0.0
    %1613 = vmatprep.subr.mxu0 0.0
    %1614 = vmatpush1.msra.mxu0 0.0
    %1615 = vmatprep.subr.mxu0 0.0
    %1616 = vmatpush1.msra.mxu0 0.0
    %1617 = vmatprep.mubr.f32.mxu0 0.0
    %1618 = vmatmul.mubr.f32.gmra.mrb[0].mxu0 %v1551
    %v1619 = vpop.f32.mrb[0].mxu0
    %v1620 = vadd.f32 0.0, %v1619
    %v1621 = vpop.f32.mrb[0].mxu0
    %1622 = vdwg.mxu0
    %1624 = vrot.lane.b32.xlu0 %v1620, 24
    %v1625 = vpop.permute.xlu0 %1624
    %1627 = vst.msk [vmem:[#allocation2 + $0x8] sm:$0xff] %vm855, %v1625
    %v1628 = vld [vmem:[#allocation2] sm:$0xff]
    %v1629 = vld [vmem:[#allocation2 + $0x8] sm:$0xff]
    %v1630 = vld [vmem:[%s6] sm:$0xff]
    %v1631 = vld [vmem:[%s6 + $0x8] sm:$0xff]
    %v1632 = vld [vmem:[%s6 + $0x10] sm:$0xff]
    %v1633 = vld [vmem:[%s6 + $0x18] sm:$0xff]
    %v1634 = vld [vmem:[%s7] sm:$0x1]
    %v1636 = vlaneseq
    %v1637 = vshrl.u32 %v1636, 7
    %v1638 = vsub.s32 0, %v1637
    %v1639 = vrot.slane %v1634, %v1638
    %v1642 = vsel %vm110, %v1628, 0
    %v1645 = vsel %vm110, %v1629, 0
    %1647 = vmatprep.subr.mxu0 0.0
    %1648 = vmatpush1.msra.mxu0 %v1630
    %1649 = vmatprep.subr.mxu0 0.0
    %1650 = vmatpush1.msra.mxu0 %v1631
    %1651 = vmatprep.subr.mxu0 0.0
    %1652 = vmatpush1.msra.mxu0 %v1632
    %1653 = vmatprep.subr.mxu0 0.0
    %1654 = vmatpush1.msra.mxu0 %v1633
    %1655 = vmatprep.subr.mxu0 0.0
    %1656 = vmatpush1.msra.mxu0 0.0
    %1657 = vmatprep.subr.mxu0 0.0
    %1658 = vmatpush1.msra.mxu0 0.0
    %1659 = vmatprep.subr.mxu0 0.0
    %1660 = vmatpush1.msra.mxu0 0.0
    %1661 = vmatprep.subr.mxu0 0.0
    %1662 = vmatpush1.msra.mxu0 0.0
    %1663 = vmatprep.subr.mxu0 0.0
    %1664 = vmatpush1.msra.mxu0 0.0
    %1665 = vmatprep.subr.mxu0 0.0
    %1666 = vmatpush1.msra.mxu0 0.0
    %1667 = vmatprep.subr.mxu0 0.0
    %1668 = vmatpush1.msra.mxu0 0.0
    %1669 = vmatprep.subr.mxu0 0.0
    %1670 = vmatpush1.msra.mxu0 0.0
    %1671 = vmatprep.subr.mxu0 0.0
    %1672 = vmatpush1.msra.mxu0 0.0
    %1673 = vmatprep.subr.mxu0 0.0
    %1674 = vmatpush1.msra.mxu0 0.0
    %1675 = vmatprep.subr.mxu0 0.0
    %1676 = vmatpush1.msra.mxu0 0.0
    %1677 = vmatprep.subr.mxu0 0.0
    %1678 = vmatpush1.msra.mxu0 0.0
    %1679 = vmatprep.subr.mxu0 0.0
    %1680 = vmatpush1.msra.mxu0 0.0
    %1681 = vmatprep.subr.mxu0 0.0
    %1682 = vmatpush1.msra.mxu0 0.0
    %1683 = vmatprep.subr.mxu0 0.0
    %1684 = vmatpush1.msra.mxu0 0.0
    %1685 = vmatprep.subr.mxu0 0.0
    %1686 = vmatpush1.msra.mxu0 0.0
    %1687 = vmatprep.subr.mxu0 0.0
    %1688 = vmatpush1.msra.mxu0 0.0
    %1689 = vmatprep.subr.mxu0 0.0
    %1690 = vmatpush1.msra.mxu0 0.0
    %1691 = vmatprep.subr.mxu0 0.0
    %1692 = vmatpush1.msra.mxu0 0.0
    %1693 = vmatprep.subr.mxu0 0.0
    %1694 = vmatpush1.msra.mxu0 0.0
    %1695 = vmatprep.subr.mxu0 0.0
    %1696 = vmatpush1.msra.mxu0 0.0
    %1697 = vmatprep.subr.mxu0 0.0
    %1698 = vmatpush1.msra.mxu0 0.0
    %1699 = vmatprep.subr.mxu0 0.0
    %1700 = vmatpush1.msra.mxu0 0.0
    %1701 = vmatprep.subr.mxu0 0.0
    %1702 = vmatpush1.msra.mxu0 0.0
    %1703 = vmatprep.subr.mxu0 0.0
    %1704 = vmatpush1.msra.mxu0 0.0
    %1705 = vmatprep.subr.mxu0 0.0
    %1706 = vmatpush1.msra.mxu0 0.0
    %1707 = vmatprep.subr.mxu0 0.0
    %1708 = vmatpush1.msra.mxu0 0.0
    %1709 = vmatprep.subr.mxu0 0.0
    %1710 = vmatpush1.msra.mxu0 0.0
    %1711 = vmatprep.mubr.f32.mxu0 0.0
    %1712 = vmatmul.mubr.f32.gmra.mrb[0].mxu0 %v1642
    %v1713 = vpop.f32.mrb[0].mxu0
    %v1714 = vadd.f32 %v1639, %v1713
    %v1715 = vpop.f32.mrb[0].mxu0
    %1716 = vmatprep.mubr.f32.mxu0 0.0
    %1717 = vmatmul.mubr.f32.gmra.mrb[0].mxu0 %v1645
    %v1718 = vpop.f32.mrb[0].mxu0
    %v1719 = vadd.f32 %v1639, %v1718
    %v1720 = vpop.f32.mrb[0].mxu0
    %1721 = vdwg.mxu0
    %1722 = vst.msk [vmem:[#allocation11] sm:$0xff] %vm110, %v1714
    %1723 = vst.msk [vmem:[#allocation11 + $0x8] sm:$0xff] %vm110, %v1719
    // Predicated region
    $region50: #{tpu_custom_call.1} parent=1 // pred_check
      _
    $region51: #{tpu_custom_call.1} parent=1 // pred_check_branch
      %1725 = sbr.rel (0) target = $region53
    $region52: #{tpu_custom_call.1} parent=1 // pred_region
      %s1727 = ssub.s32 256, 256
      %1728 = vsyncadd [#allocation5], %s1727
      %s1729 = sshll.u32 [#allocation11], 4
      %s1730 = int_to_ptr.vmem [resolvable:$true] %s1729
      %1735 = dma.vmem_to_hbm [thread:$0]  %s1730, 256, %s8, [#allocation5], 128, 128, 8
    $region53: #{tpu_custom_call.1} parent=1 // pred_fallthru
      _
    // Predicated region
    $region54: #{tpu_custom_call.1} parent=1 // pred_check
      _
    $region55: #{tpu_custom_call.1} parent=1 // pred_check_branch
      %1737 = sbr.rel (0) target = $region57
    $region56: #{tpu_custom_call.1} parent=1 // pred_region
      %s1739 = ssub.s32 256, 256
      %1740 = vsyncadd [#allocation13], %s1739
      %s1741 = sshll.u32 [#allocation12], 4
      %s1742 = int_to_ptr.vmem [resolvable:$true] %s1741
      %1747 = dma.vmem_to_hbm [thread:$0]  %s1742, 256, %s9, [#allocation13], 128, 128, 8
    $region57: #{tpu_custom_call.1} parent=1 // pred_fallthru
      _
    // Predicated region
    $region58: #{tpu_custom_call.1} parent=1 // pred_check
      _
    $region59: #{tpu_custom_call.1} parent=1 // pred_check_branch
      %1749 = sbr.rel (0) target = $region61
    $region60: #{tpu_custom_call.1} parent=1 // pred_region
      %1750 = dma.done [#allocation5], 256
    $region61: #{tpu_custom_call.1} parent=1 // pred_fallthru
      _
    // Predicated region
    $region62: #{tpu_custom_call.1} parent=1 // pred_check
      _
    $region63: #{tpu_custom_call.1} parent=1 // pred_check_branch
      %1752 = sbr.rel (0) target = $region65
    $region64: #{tpu_custom_call.1} parent=1 // pred_region
      %1753 = dma.done [#allocation13], 256
    $region65: #{tpu_custom_call.1} parent=1 // pred_fallthru
      _
    %1754 = vsyncpa [#allocation4], 1
    %1755 = vsyncpa [#allocation7], 1
    %1756 = vsyncpa [#allocation10], 1
    %1757 = vsyncpa [#allocation5], 1
    %1758 = vsyncpa [#allocation13], 1

</llo_original>
